<compile_context>
chip_gen: v7x
topology: tpu7x:2x2x1
jax: 0.10.0
libtpu: 0.0.40
codegen_flags: <defaults>
</compile_context>

<pallas_src>
import jax
import jax.numpy as jnp
from jax import lax
from jax.experimental import pallas as pl
from jax.experimental.pallas import tpu as pltpu


def _pad8(n: int) -> int:
    return ((n + 7) // 8) * 8


# ------------------------- host-side parameter packing ----------------------- #

def _pack_params(params, edge_dim):
    """Pack every weight & bias into ONE [K, H] f32 slab (single input DMA).

    * torch.cat(...) feeding edge/node MLP layer 0 is folded into that layer by
      splitting its weight into per-block pieces (identical math).
    * The (x_nei - x_own) @ W_diff term is folded into W_nei / W_own host-side.
    * Each piece is padded to a multiple of 8 rows and width H, so every
      in-kernel slice is (8,128)-tile friendly; the matching activations are
      zero-padded in the wrapper so the pad rows contribute nothing.
    Returns (slab, weight_layout, bias_base_row, H, out_ch).
    """
    enc = params["node_encoder"]
    edge_mlp = params["edge_updater"]
    node_mlp = params["node_updater"]
    dec = params["node_decoder"]
    H = enc[-1][0].shape[1]
    out_ch = dec[-1][0].shape[1]
    D = edge_dim
    assert H % 8 == 0, "hidden_channels must be a multiple of 8 for this packing"

    # Edge MLP layer 0: split cat(edge_attr, x_nei, x_own, x_nei - x_own) weight
    # and fold the diff block into the nei/own blocks.
    ew0, eb0 = edge_mlp[0]
    w_ea = ew0[0:D]
    w_nei = ew0[D:D + H] + ew0[D + 2 * H:D + 3 * H]            # + W_diff
    w_own = ew0[D + H:D + 2 * H] - ew0[D + 2 * H:D + 3 * H]    # - W_diff

    # Node MLP layer 0: split cat(x, edge_agg) weight.
    nw0, nb0 = node_mlp[0]
    w_nx, w_nagg = nw0[0:H], nw0[H:2 * H]

    # Canonical weight-piece order == the order the kernel consumes them.
    w_pieces = [w for (w, _b) in enc]
    w_pieces += [w_ea, w_nei, w_own]
    w_pieces += [w for (w, _b) in edge_mlp[1:]]
    w_pieces += [w_nx, w_nagg]
    w_pieces += [w for (w, _b) in node_mlp[1:]]
    w_pieces += [w for (w, _b) in dec]

    layout = []
    padded = []
    off = 0
    for w in w_pieces:
        r, c = w.shape
        rp = _pad8(r)
        padded.append(jnp.zeros((rp, H), jnp.float32).at[:r, :c].set(w))
        layout.append((off, rp))
        off += rp

    # Bias rows (same layer order as consumption), one row each, width-H padded.
    biases = ([b for (_w, b) in enc] + [eb0] + [b for (_w, b) in edge_mlp[1:]]
              + [nb0] + [b for (_w, b) in node_mlp[1:]] + [b for (_w, b) in dec])
    bias_base = off
    b_rows = jnp.zeros((len(biases), H), jnp.float32)
    for j, b in enumerate(biases):
        b_rows = b_rows.at[j, :b.shape[0]].set(b)
    padded.append(b_rows)

    slab = jnp.concatenate(padded, axis=0)
    return slab, tuple(layout), bias_base, H, out_ch


# ------------------------------ fused kernel ------------------------------- #

def _make_fused_kernel(n_enc, n_edge, n_node, n_dec, layout, bias_base, E, out_ch):
    f32 = jnp.float32

    def kernel(idx_ref, x_ref, ea_ref, p_ref, o_ref):
        w_it = iter(layout)
        b_it = iter(range(n_enc + n_edge + n_node + n_dec))

        def next_w():
            off, rows = next(w_it)
            return p_ref[pl.ds(off, rows), :]          # static, 8-aligned slice

        def next_b():
            j = next(b_it)
            return p_ref[pl.ds(bias_base + j, 1), :]   # [1, H]

        def dense(v, w, b, act):
            y = jnp.dot(v, w, preferred_element_type=f32) + b
            return jnp.maximum(y, 0.0) if act else y

        x = x_ref[...]                                  # [N, pad8(C_in)]
        N = x.shape[0]

        # ---------------------------- node encoder MLP ----------------------------
        h = x
        for j in range(n_enc):
            h = dense(h, next_w(), next_b(), act=(j < n_enc - 1))
        h_node = h                                      # [N, H]

        # -------- stacked one-hot gather: x[src] and x[tgt] in ONE matmul ---------
        idx = idx_ref[...]                              # [2E, 1] int32 (src rows, then tgt rows)
        iota_n = lax.broadcasted_iota(jnp.int32, (2 * E, N), 1)
        oh = (iota_n == idx).astype(f32)                # [2E, N]
        gathered = jnp.dot(oh, h_node, preferred_element_type=f32)   # [2E, H]
        x_nei = gathered[:E]                            # x[edge_index[0]]
        x_own = gathered[E:]                            # x[edge_index[1]]
        g_tgt = oh[E:]                                  # [E, N] target one-hot (reused below)

        # -------- edge updater MLP (concat + diff term folded into weights) --------
        ea = (jnp.dot(ea_ref[...], next_w(), preferred_element_type=f32)
              + jnp.dot(x_nei, next_w(), preferred_element_type=f32)
              + jnp.dot(x_own, next_w(), preferred_element_type=f32)
              + next_b())
        if n_edge > 1:
            ea = jnp.maximum(ea, 0.0)
        for j in range(1, n_edge):
            ea = dense(ea, next_w(), next_b(), act=(j < n_edge - 1))

        # ----- mean aggregation at target nodes: reuse g_tgt, contract over E ------
        dn = (((0,), (0,)), ((), ()))                   # g_tgt^T @ (.)
        edge_sum = lax.dot_general(g_tgt, ea, dn, preferred_element_type=f32)  # [N, H]
        deg = lax.dot_general(g_tgt, jnp.ones((E, 1), f32), dn,
                              preferred_element_type=f32)                      # [N, 1]
        # Exact reciprocal; approx=True is a further EUP win once re-validated at 1e-4.
        edge_agg = edge_sum * pl.reciprocal(jnp.maximum(deg, 1.0), approx=False)

        # -------------- node updater MLP (concat folded into weights) --------------
        h = (jnp.dot(h_node, next_w(), preferred_element_type=f32)
             + jnp.dot(edge_agg, next_w(), preferred_element_type=f32)
             + next_b())
        if n_node > 1:
            h = jnp.maximum(h, 0.0)
        for j in range(1, n_node):
            h = dense(h, next_w(), next_b(), act=(j < n_node - 1))

        # -------------------------------- decoder ----------------------------------
        for j in range(n_dec):
            w, b = next_w(), next_b()
            if j == n_dec - 1:                          # true output width
                w, b = w[:, :out_ch], b[:, :out_ch]
            h = dense(h, w, b, act=(j < n_dec - 1))

        # TODO(synk): out_ch << 128 lowers to a masked partial store; present a
        # lane-dense output layout if N grows while out_ch stays small.
        o_ref[...] = h.astype(o_ref.dtype)

    return kernel


# --------------------------------- wrapper ---------------------------------- #

def mp_gnn_forward(params, x, edge_index, edge_attr, pos=None, batch=None):
    """Pallas forward for mp_gnn (pos / batch accepted but unused, as in torch)."""
    del pos, batch
    N, C_in = x.shape
    E = edge_index.shape[1]
    D = edge_attr.shape[1]

    slab, layout, bias_base, H, out_ch = _pack_params(params, D)

    n_enc = len(params["node_encoder"])
    n_edge = len(params["edge_updater"])
    n_node = len(params["node_updater"])
    n_dec = len(params["node_decoder"])

    # Single stacked index column: rows [0,E) = edge_index[0], rows [E,2E) = edge_index[1].
    idx = edge_index.astype(jnp.int32).reshape(2 * E, 1)

    # Zero-pad narrow activations so the matching slab pieces are 8-row aligned.
    x_pad = jnp.zeros((N, _pad8(C_in)), jnp.float32).at[:, :C_in].set(x)
    ea_pad = jnp.zeros((E, _pad8(D)), jnp.float32).at[:, :D].set(edge_attr)

    kernel = _make_fused_kernel(n_enc, n_edge, n_node, n_dec, layout, bias_base,
                                E, out_ch)

    vmem = pltpu.MemorySpace.VMEM
    # TODO(synk): at realistic N/E sizes, switch to a node/edge-tiled grid
    # ("parallel" node tiles for the 2 TCs on v7x, "arbitrary" reduction over E
    # with a VMEM accumulator) — the O(E*N) in-kernel one-hot stops being the
    # right gather algorithm at scale and v7x only has 64 MiB VMEM.
    return pl.pallas_call(
        kernel,
        out_shape=jax.ShapeDtypeStruct((N, out_ch), jnp.float32),
        # Whole-array VMEM blocks, empty grid: one program, everything resident.
        in_specs=[pl.BlockSpec(memory_space=vmem)] * 4,
        out_specs=pl.BlockSpec(memory_space=vmem),
        compiler_params=pltpu.CompilerParams(vmem_limit_bytes=32 * 1024 * 1024),
    )(idx, x_pad, ea_pad, slab)


# ----------------------------- parameter setup ------------------------------ #

def _init_linear(key, fan_in, fan_out):
    """Uniform init like torch's default (scale 1/sqrt(fan_in)).
    Weight stored as [fan_in, fan_out] (transpose of torch layout)."""
    kw, kb = jax.random.split(key)
    bound = 1.0 / jnp.sqrt(jnp.float32(fan_in))
    w = jax.random.uniform(kw, (fan_in, fan_out), jnp.float32, -bound, bound)
    b = jax.random.uniform(kb, (fan_out,), jnp.float32, -bound, bound)
    return w, b


def init_mp_gnn_params(key, input_channels, hidden_channels, output_channels,
                       n_mlp_layers):
    keys = iter(jax.random.split(key, 64))
    H = hidden_channels

    node_encoder = []
    for j in range(n_mlp_layers[0]):
        fi = input_channels if j == 0 else H
        node_encoder.append(_init_linear(next(keys), fi, H))

    node_decoder = []
    for j in range(n_mlp_layers[0]):
        fo = output_channels if j == n_mlp_layers[0] - 1 else H
        node_decoder.append(_init_linear(next(keys), H, fo))

    edge_updater = []
    for j in range(n_mlp_layers[1]):
        fi = H * 3 + 4 if j == 0 else H
        edge_updater.append(_init_linear(next(keys), fi, H))

    node_updater = []
    for j in range(n_mlp_layers[2]):
        fi = H * 2 if j == 0 else H
        node_updater.append(_init_linear(next(keys), fi, H))

    return dict(node_encoder=node_encoder, node_decoder=node_decoder,
                edge_updater=edge_updater, node_updater=node_updater)


# ----------------------------- pure-JAX reference --------------------------- #

def _ref_mlp(x, layers):
    n = len(layers)
    for j, (w, b) in enumerate(layers):
        x = x @ w + b
        if j < n - 1:
            x = jnp.maximum(x, 0.0)
    return x


def mp_gnn_reference(params, x, edge_index, edge_attr):
    num_nodes = x.shape[0]
    x = _ref_mlp(x, params["node_encoder"])
    src, tgt = edge_index[0], edge_index[1]
    x_nei = x[src]
    x_own = x[tgt]
    ea = jnp.concatenate([edge_attr, x_nei, x_own, x_nei - x_own], axis=1)
    ea = _ref_mlp(ea, params["edge_updater"])
    seg_sum = jax.ops.segment_sum(ea, tgt, num_segments=num_nodes)
    deg = jax.ops.segment_sum(jnp.ones((ea.shape[0],), jnp.float32), tgt,
                              num_segments=num_nodes)
    edge_agg = seg_sum / jnp.maximum(deg, 1.0)[:, None]
    x = jnp.concatenate([x, edge_agg], axis=1)
    x = _ref_mlp(x, params["node_updater"])
    x = _ref_mlp(x, params["node_decoder"])
    return x


# ----------------------------------- main ----------------------------------- #

if __name__ == "__main__":
    # Small, architecture-consistent shapes.
    num_nodes = 32
    num_edges = 64
    input_channels = 4
    hidden_channels = 32
    output_channels = 4
    edge_dim = 4                 # fixed by the module: edge MLP input = 3*H + 4
    n_mlp_layers = [2, 2, 2]     # [encoder/decoder depth, edge MLP, node MLP]

    key = jax.random.PRNGKey(0)
    k_param, k_x, k_ei, k_ea, k_pos = jax.random.split(key, 5)

    params = init_mp_gnn_params(k_param, input_channels, hidden_channels,
                                output_channels, n_mlp_layers)

    x = jax.random.normal(k_x, (num_nodes, input_channels), jnp.float32)
    edge_index = jax.random.randint(k_ei, (2, num_edges), 0, num_nodes,
                                    dtype=jnp.int32)
    edge_attr = jax.random.normal(k_ea, (num_edges, edge_dim), jnp.float32)
    pos = jax.random.normal(k_pos, (num_nodes, 3), jnp.float32)  # unused by forward

    fwd = jax.jit(mp_gnn_forward)
    out = jax.block_until_ready(fwd(params, x, edge_index, edge_attr, pos))

    ref = mp_gnn_reference(params, x, edge_index, edge_attr)
    assert out.shape == (num_nodes, output_channels)
    assert jnp.allclose(out, ref, atol=1e-4, rtol=1e-4)

    print("KERNEL_OK")
</pallas_src>

<mosaic_0001>
module attributes {stable_mosaic.version = 11 : i64} {
  func.func @kernel(%arg0: memref<128x1xi32, #tpu.memory_space<vmem>>, %arg1: memref<32x8xf32, #tpu.memory_space<vmem>>, %arg2: memref<64x8xf32, #tpu.memory_space<vmem>>, %arg3: memref<312x32xf32, #tpu.memory_space<vmem>>, %arg4: memref<32x4xf32, #tpu.memory_space<vmem>>) attributes {dimension_semantics = [], scalar_prefetch = 0 : i64, scratch_operands = 0 : i64, tpu.core_type = #tpu.core_type<tc>} {
    %c0 = arith.constant 0 : index
    %c0_0 = arith.constant 0 : index
    %0 = vector.load %arg1[%c0, %c0_0] : memref<32x8xf32, #tpu.memory_space<vmem>>, vector<32x8xf32>
    %c0_1 = arith.constant 0 : index
    %c0_2 = arith.constant 0 : index
    %1 = vector.load %arg3[%c0_1, %c0_2] : memref<312x32xf32, #tpu.memory_space<vmem>>, vector<8x32xf32>
    %c304 = arith.constant 304 : index
    %c0_3 = arith.constant 0 : index
    %2 = vector.load %arg3[%c304, %c0_3] : memref<312x32xf32, #tpu.memory_space<vmem>>, vector<1x32xf32>
    %cst = arith.constant dense<0.000000e+00> : vector<32x32xf32>
    %3 = tpu.matmul %0, %1, %cst {dimension_numbers = #tpu.dot_dimension_numbers<[1], [0], [0], [1], [0, 0, 1, 1], [], []>} : vector<32x8xf32>, vector<8x32xf32>, vector<32x32xf32> -> vector<32x32xf32>
    %4 = vector.broadcast %2 : vector<1x32xf32> to vector<32x32xf32>
    %5 = arith.addf %3, %4 : vector<32x32xf32>
    %cst_4 = arith.constant 0.000000e+00 : f32
    %6 = vector.broadcast %cst_4 : f32 to vector<32x32xf32>
    %7 = arith.maximumf %5, %6 : vector<32x32xf32>
    %c8 = arith.constant 8 : index
    %c0_5 = arith.constant 0 : index
    %8 = vector.load %arg3[%c8, %c0_5] : memref<312x32xf32, #tpu.memory_space<vmem>>, vector<32x32xf32>
    %c305 = arith.constant 305 : index
    %c0_6 = arith.constant 0 : index
    %9 = vector.load %arg3[%c305, %c0_6] : memref<312x32xf32, #tpu.memory_space<vmem>>, vector<1x32xf32>
    %cst_7 = arith.constant dense<0.000000e+00> : vector<32x32xf32>
    %10 = tpu.matmul %7, %8, %cst_7 {dimension_numbers = #tpu.dot_dimension_numbers<[1], [0], [0], [1], [0, 0, 1, 1], [], []>} : vector<32x32xf32>, vector<32x32xf32>, vector<32x32xf32> -> vector<32x32xf32>
    %11 = vector.broadcast %9 : vector<1x32xf32> to vector<32x32xf32>
    %12 = arith.addf %10, %11 : vector<32x32xf32>
    %c0_8 = arith.constant 0 : index
    %c0_9 = arith.constant 0 : index
    %13 = vector.load %arg0[%c0_8, %c0_9] : memref<128x1xi32, #tpu.memory_space<vmem>>, vector<128x1xi32>
    %14 = tpu.iota {dimensions = array<i32: 1>} : vector<128x32xi32>
    %15 = vector.broadcast %13 : vector<128x1xi32> to vector<128x32xi32>
    %16 = arith.cmpi eq, %14, %15 : vector<128x32xi32>
    %17 = arith.extui %16 : vector<128x32xi1> to vector<128x32xi32>
    %18 = arith.sitofp %17 : vector<128x32xi32> to vector<128x32xf32>
    %cst_10 = arith.constant dense<0.000000e+00> : vector<128x32xf32>
    %19 = tpu.matmul %18, %12, %cst_10 {dimension_numbers = #tpu.dot_dimension_numbers<[1], [0], [0], [1], [0, 0, 1, 1], [], []>} : vector<128x32xf32>, vector<32x32xf32>, vector<128x32xf32> -> vector<128x32xf32>
    %20 = vector.extract_strided_slice %19 {offsets = [0, 0], sizes = [64, 32], strides = [1, 1]} : vector<128x32xf32> to vector<64x32xf32>
    %21 = vector.extract_strided_slice %19 {offsets = [64, 0], sizes = [64, 32], strides = [1, 1]} : vector<128x32xf32> to vector<64x32xf32>
    %22 = vector.extract_strided_slice %18 {offsets = [64, 0], sizes = [64, 32], strides = [1, 1]} : vector<128x32xf32> to vector<64x32xf32>
    %c0_11 = arith.constant 0 : index
    %c0_12 = arith.constant 0 : index
    %23 = vector.load %arg2[%c0_11, %c0_12] : memref<64x8xf32, #tpu.memory_space<vmem>>, vector<64x8xf32>
    %c40 = arith.constant 40 : index
    %c0_13 = arith.constant 0 : index
    %24 = vector.load %arg3[%c40, %c0_13] : memref<312x32xf32, #tpu.memory_space<vmem>>, vector<8x32xf32>
    %cst_14 = arith.constant dense<0.000000e+00> : vector<64x32xf32>
    %25 = tpu.matmul %23, %24, %cst_14 {dimension_numbers = #tpu.dot_dimension_numbers<[1], [0], [0], [1], [0, 0, 1, 1], [], []>} : vector<64x8xf32>, vector<8x32xf32>, vector<64x32xf32> -> vector<64x32xf32>
    %c48 = arith.constant 48 : index
    %c0_15 = arith.constant 0 : index
    %26 = vector.load %arg3[%c48, %c0_15] : memref<312x32xf32, #tpu.memory_space<vmem>>, vector<32x32xf32>
    %cst_16 = arith.constant dense<0.000000e+00> : vector<64x32xf32>
    %27 = tpu.matmul %20, %26, %cst_16 {dimension_numbers = #tpu.dot_dimension_numbers<[1], [0], [0], [1], [0, 0, 1, 1], [], []>} : vector<64x32xf32>, vector<32x32xf32>, vector<64x32xf32> -> vector<64x32xf32>
    %28 = arith.addf %25, %27 : vector<64x32xf32>
    %c80 = arith.constant 80 : index
    %c0_17 = arith.constant 0 : index
    %29 = vector.load %arg3[%c80, %c0_17] : memref<312x32xf32, #tpu.memory_space<vmem>>, vector<32x32xf32>
    %cst_18 = arith.constant dense<0.000000e+00> : vector<64x32xf32>
    %30 = tpu.matmul %21, %29, %cst_18 {dimension_numbers = #tpu.dot_dimension_numbers<[1], [0], [0], [1], [0, 0, 1, 1], [], []>} : vector<64x32xf32>, vector<32x32xf32>, vector<64x32xf32> -> vector<64x32xf32>
    %31 = arith.addf %28, %30 : vector<64x32xf32>
    %c306 = arith.constant 306 : index
    %c0_19 = arith.constant 0 : index
    %32 = vector.load %arg3[%c306, %c0_19] : memref<312x32xf32, #tpu.memory_space<vmem>>, vector<1x32xf32>
    %33 = vector.broadcast %32 : vector<1x32xf32> to vector<64x32xf32>
    %34 = arith.addf %31, %33 : vector<64x32xf32>
    %cst_20 = arith.constant 0.000000e+00 : f32
    %35 = vector.broadcast %cst_20 : f32 to vector<64x32xf32>
    %36 = arith.maximumf %34, %35 : vector<64x32xf32>
    %c112 = arith.constant 112 : index
    %c0_21 = arith.constant 0 : index
    %37 = vector.load %arg3[%c112, %c0_21] : memref<312x32xf32, #tpu.memory_space<vmem>>, vector<32x32xf32>
    %c307 = arith.constant 307 : index
    %c0_22 = arith.constant 0 : index
    %38 = vector.load %arg3[%c307, %c0_22] : memref<312x32xf32, #tpu.memory_space<vmem>>, vector<1x32xf32>
    %cst_23 = arith.constant dense<0.000000e+00> : vector<64x32xf32>
    %39 = tpu.matmul %36, %37, %cst_23 {dimension_numbers = #tpu.dot_dimension_numbers<[1], [0], [0], [1], [0, 0, 1, 1], [], []>} : vector<64x32xf32>, vector<32x32xf32>, vector<64x32xf32> -> vector<64x32xf32>
    %40 = vector.broadcast %38 : vector<1x32xf32> to vector<64x32xf32>
    %41 = arith.addf %39, %40 : vector<64x32xf32>
    %cst_24 = arith.constant dense<0.000000e+00> : vector<32x32xf32>
    %42 = tpu.matmul %22, %41, %cst_24 {dimension_numbers = #tpu.dot_dimension_numbers<[0], [0], [1], [1], [0, 1, 1, 1], [], []>} : vector<64x32xf32>, vector<64x32xf32>, vector<32x32xf32> -> vector<32x32xf32>
    %cst_25 = arith.constant 1.000000e+00 : f32
    %43 = vector.broadcast %cst_25 : f32 to vector<64x1xf32>
    %cst_26 = arith.constant dense<0.000000e+00> : vector<32x1xf32>
    %44 = tpu.matmul %22, %43, %cst_26 {dimension_numbers = #tpu.dot_dimension_numbers<[0], [0], [1], [1], [0, 1, 1, 1], [], []>} : vector<64x32xf32>, vector<64x1xf32>, vector<32x1xf32> -> vector<32x1xf32>
    %cst_27 = arith.constant 1.000000e+00 : f32
    %45 = vector.broadcast %cst_27 : f32 to vector<32x1xf32>
    %46 = arith.maximumf %44, %45 : vector<32x1xf32>
    %47 = tpu.reciprocal %46 : vector<32x1xf32> -> vector<32x1xf32>
    %48 = vector.broadcast %47 : vector<32x1xf32> to vector<32x32xf32>
    %49 = arith.mulf %42, %48 : vector<32x32xf32>
    %c144 = arith.constant 144 : index
    %c0_28 = arith.constant 0 : index
    %50 = vector.load %arg3[%c144, %c0_28] : memref<312x32xf32, #tpu.memory_space<vmem>>, vector<32x32xf32>
    %cst_29 = arith.constant dense<0.000000e+00> : vector<32x32xf32>
    %51 = tpu.matmul %12, %50, %cst_29 {dimension_numbers = #tpu.dot_dimension_numbers<[1], [0], [0], [1], [0, 0, 1, 1], [], []>} : vector<32x32xf32>, vector<32x32xf32>, vector<32x32xf32> -> vector<32x32xf32>
    %c176 = arith.constant 176 : index
    %c0_30 = arith.constant 0 : index
    %52 = vector.load %arg3[%c176, %c0_30] : memref<312x32xf32, #tpu.memory_space<vmem>>, vector<32x32xf32>
    %cst_31 = arith.constant dense<0.000000e+00> : vector<32x32xf32>
    %53 = tpu.matmul %49, %52, %cst_31 {dimension_numbers = #tpu.dot_dimension_numbers<[1], [0], [0], [1], [0, 0, 1, 1], [], []>} : vector<32x32xf32>, vector<32x32xf32>, vector<32x32xf32> -> vector<32x32xf32>
    %54 = arith.addf %51, %53 : vector<32x32xf32>
    %c308 = arith.constant 308 : index
    %c0_32 = arith.constant 0 : index
    %55 = vector.load %arg3[%c308, %c0_32] : memref<312x32xf32, #tpu.memory_space<vmem>>, vector<1x32xf32>
    %56 = vector.broadcast %55 : vector<1x32xf32> to vector<32x32xf32>
    %57 = arith.addf %54, %56 : vector<32x32xf32>
    %cst_33 = arith.constant 0.000000e+00 : f32
    %58 = vector.broadcast %cst_33 : f32 to vector<32x32xf32>
    %59 = arith.maximumf %57, %58 : vector<32x32xf32>
    %c208 = arith.constant 208 : index
    %c0_34 = arith.constant 0 : index
    %60 = vector.load %arg3[%c208, %c0_34] : memref<312x32xf32, #tpu.memory_space<vmem>>, vector<32x32xf32>
    %c309 = arith.constant 309 : index
    %c0_35 = arith.constant 0 : index
    %61 = vector.load %arg3[%c309, %c0_35] : memref<312x32xf32, #tpu.memory_space<vmem>>, vector<1x32xf32>
    %cst_36 = arith.constant dense<0.000000e+00> : vector<32x32xf32>
    %62 = tpu.matmul %59, %60, %cst_36 {dimension_numbers = #tpu.dot_dimension_numbers<[1], [0], [0], [1], [0, 0, 1, 1], [], []>} : vector<32x32xf32>, vector<32x32xf32>, vector<32x32xf32> -> vector<32x32xf32>
    %63 = vector.broadcast %61 : vector<1x32xf32> to vector<32x32xf32>
    %64 = arith.addf %62, %63 : vector<32x32xf32>
    %c240 = arith.constant 240 : index
    %c0_37 = arith.constant 0 : index
    %65 = vector.load %arg3[%c240, %c0_37] : memref<312x32xf32, #tpu.memory_space<vmem>>, vector<32x32xf32>
    %c310 = arith.constant 310 : index
    %c0_38 = arith.constant 0 : index
    %66 = vector.load %arg3[%c310, %c0_38] : memref<312x32xf32, #tpu.memory_space<vmem>>, vector<1x32xf32>
    %cst_39 = arith.constant dense<0.000000e+00> : vector<32x32xf32>
    %67 = tpu.matmul %64, %65, %cst_39 {dimension_numbers = #tpu.dot_dimension_numbers<[1], [0], [0], [1], [0, 0, 1, 1], [], []>} : vector<32x32xf32>, vector<32x32xf32>, vector<32x32xf32> -> vector<32x32xf32>
    %68 = vector.broadcast %66 : vector<1x32xf32> to vector<32x32xf32>
    %69 = arith.addf %67, %68 : vector<32x32xf32>
    %cst_40 = arith.constant 0.000000e+00 : f32
    %70 = vector.broadcast %cst_40 : f32 to vector<32x32xf32>
    %71 = arith.maximumf %69, %70 : vector<32x32xf32>
    %c272 = arith.constant 272 : index
    %c0_41 = arith.constant 0 : index
    %72 = vector.load %arg3[%c272, %c0_41] : memref<312x32xf32, #tpu.memory_space<vmem>>, vector<32x32xf32>
    %c311 = arith.constant 311 : index
    %c0_42 = arith.constant 0 : index
    %73 = vector.load %arg3[%c311, %c0_42] : memref<312x32xf32, #tpu.memory_space<vmem>>, vector<1x32xf32>
    %74 = vector.extract_strided_slice %72 {offsets = [0, 0], sizes = [32, 4], strides = [1, 1]} : vector<32x32xf32> to vector<32x4xf32>
    %75 = vector.extract_strided_slice %73 {offsets = [0, 0], sizes = [1, 4], strides = [1, 1]} : vector<1x32xf32> to vector<1x4xf32>
    %cst_43 = arith.constant dense<0.000000e+00> : vector<32x4xf32>
    %76 = tpu.matmul %71, %74, %cst_43 {dimension_numbers = #tpu.dot_dimension_numbers<[1], [0], [0], [1], [0, 0, 1, 1], [], []>} : vector<32x32xf32>, vector<32x4xf32>, vector<32x4xf32> -> vector<32x4xf32>
    %77 = vector.broadcast %75 : vector<1x4xf32> to vector<32x4xf32>
    %78 = arith.addf %76, %77 : vector<32x4xf32>
    %c0_44 = arith.constant 0 : index
    %c0_45 = arith.constant 0 : index
    %79 = vector.load %arg4[%c0_44, %c0_45] : memref<32x4xf32, #tpu.memory_space<vmem>>, vector<32x4xf32>
    tpu.vector_store %arg4[%c0_44, %c0_45], %78 {strides = array<i32>} : memref<32x4xf32, #tpu.memory_space<vmem>>, vector<32x4xf32>,
    return
  }
}

</mosaic_0001>

<llo_original>
// kernel: mp_gnn_forward.1
$region0: #{mp_gnn_forward.1}
  #allocation0 [shape = 'u32[]', space=smem, size = 0x4, offset = 0x4, fixed_abs, tag = 'smem constant byte address 0x4 - core index']
  #allocation1 [shape = 'u32[144,128]{1,0:T(1,128)}', space=vmem, size = 0x12000, scoped, tag = 'internal scratch']
  %s0 = inlined_call_operand.vmem [shape: s32[128,1], index: 0, kind: input, shape index: {}]
  %s1 = inlined_call_operand.vmem [shape: f32[32,8], index: 1, kind: input, shape index: {}]
  %s2 = inlined_call_operand.vmem [shape: f32[64,8], index: 2, kind: input, shape index: {}]
  %s3 = inlined_call_operand.vmem [shape: f32[312,32], index: 3, kind: input, shape index: {}]
  %s4 = inlined_call_operand.vmem [shape: f32[32,4], index: 4, kind: output, shape index: {}]
  %s5 = sld [smem:[#allocation0]]
  $region26: #{mp_gnn_forward.1} parent=0
    _
  %s7 = ssub.s32 1, %s5
  %s8 = scalar_select 0, %s7, %s5
  // Predicated region
  $region2: #{mp_gnn_forward.1} parent=0 // pred_check
    _
  $region3: #{mp_gnn_forward.1} parent=0 // pred_check_branch
    %10 = sbr.rel (0) target = $region5
  $region4: #{mp_gnn_forward.1} parent=0 // pred_region
    _
  $region5: #{mp_gnn_forward.1} parent=0 // pred_fallthru
    _
  // Predicated region
  $region6: #{mp_gnn_forward.1} parent=0 // pred_check
    _
  $region7: #{mp_gnn_forward.1} parent=0 // pred_check_branch
    %12 = sbr.rel (0) target = $region9
  $region8: #{mp_gnn_forward.1} parent=0 // pred_region
    _
  $region9: #{mp_gnn_forward.1} parent=0 // pred_fallthru
    _
  // Predicated region
  $region10: #{mp_gnn_forward.1} parent=0 // pred_check
    _
  $region11: #{mp_gnn_forward.1} parent=0 // pred_check_branch
    %14 = sbr.rel (0) target = $region13
  $region12: #{mp_gnn_forward.1} parent=0 // pred_region
    _
  $region13: #{mp_gnn_forward.1} parent=0 // pred_fallthru
    _
  // Predicated region
  $region14: #{mp_gnn_forward.1} parent=0 // pred_check
    _
  $region15: #{mp_gnn_forward.1} parent=0 // pred_check_branch
    %16 = sbr.rel (0) target = $region17
  $region16: #{mp_gnn_forward.1} parent=0 // pred_region
    _
  $region17: #{mp_gnn_forward.1} parent=0 // pred_fallthru
    _
  %v17 = vld [vmem:[%s1] sm:$0xff]
  %v18 = vld [vmem:[%s1 + $0x8] sm:$0xff]
  %v19 = vld [vmem:[%s1 + $0x10] sm:$0xff]
  %v20 = vld [vmem:[%s1 + $0x18] sm:$0xff]
  %v21 = vld [vmem:[%s3] sm:$0xff]
  %v22 = vld [vmem:[%s3 + $0x130] sm:$0x1]
  %v23 = vlaneseq
  %v24 = vshrl.u32 %v23, 7
  %v25 = vsub.s32 0, %v24
  %v26 = vrot.slane %v22, %v25
  %vm27 = vcmask 64512
  %v29 = vsel %vm27, %v17, 0
  %v32 = vsel %vm27, %v18, 0
  %v35 = vsel %vm27, %v19, 0
  %v38 = vsel %vm27, %v20, 0
  %40 = vmatprep.subr.mxu0 0.0
  %41 = vmatpush1.msra.mxu0 %v21
  %42 = vmatprep.subr.mxu0 0.0
  %43 = vmatpush1.msra.mxu0 0.0
  %44 = vmatprep.subr.mxu0 0.0
  %45 = vmatpush1.msra.mxu0 0.0
  %46 = vmatprep.subr.mxu0 0.0
  %47 = vmatpush1.msra.mxu0 0.0
  %48 = vmatprep.subr.mxu0 0.0
  %49 = vmatpush1.msra.mxu0 0.0
  %50 = vmatprep.subr.mxu0 0.0
  %51 = vmatpush1.msra.mxu0 0.0
  %52 = vmatprep.subr.mxu0 0.0
  %53 = vmatpush1.msra.mxu0 0.0
  %54 = vmatprep.subr.mxu0 0.0
  %55 = vmatpush1.msra.mxu0 0.0
  %56 = vmatprep.subr.mxu0 0.0
  %57 = vmatpush1.msra.mxu0 0.0
  %58 = vmatprep.subr.mxu0 0.0
  %59 = vmatpush1.msra.mxu0 0.0
  %60 = vmatprep.subr.mxu0 0.0
  %61 = vmatpush1.msra.mxu0 0.0
  %62 = vmatprep.subr.mxu0 0.0
  %63 = vmatpush1.msra.mxu0 0.0
  %64 = vmatprep.subr.mxu0 0.0
  %65 = vmatpush1.msra.mxu0 0.0
  %66 = vmatprep.subr.mxu0 0.0
  %67 = vmatpush1.msra.mxu0 0.0
  %68 = vmatprep.subr.mxu0 0.0
  %69 = vmatpush1.msra.mxu0 0.0
  %70 = vmatprep.subr.mxu0 0.0
  %71 = vmatpush1.msra.mxu0 0.0
  %72 = vmatprep.subr.mxu0 0.0
  %73 = vmatpush1.msra.mxu0 0.0
  %74 = vmatprep.subr.mxu0 0.0
  %75 = vmatpush1.msra.mxu0 0.0
  %76 = vmatprep.subr.mxu0 0.0
  %77 = vmatpush1.msra.mxu0 0.0
  %78 = vmatprep.subr.mxu0 0.0
  %79 = vmatpush1.msra.mxu0 0.0
  %80 = vmatprep.subr.mxu0 0.0
  %81 = vmatpush1.msra.mxu0 0.0
  %82 = vmatprep.subr.mxu0 0.0
  %83 = vmatpush1.msra.mxu0 0.0
  %84 = vmatprep.subr.mxu0 0.0
  %85 = vmatpush1.msra.mxu0 0.0
  %86 = vmatprep.subr.mxu0 0.0
  %87 = vmatpush1.msra.mxu0 0.0
  %88 = vmatprep.subr.mxu0 0.0
  %89 = vmatpush1.msra.mxu0 0.0
  %90 = vmatprep.subr.mxu0 0.0
  %91 = vmatpush1.msra.mxu0 0.0
  %92 = vmatprep.subr.mxu0 0.0
  %93 = vmatpush1.msra.mxu0 0.0
  %94 = vmatprep.subr.mxu0 0.0
  %95 = vmatpush1.msra.mxu0 0.0
  %96 = vmatprep.subr.mxu0 0.0
  %97 = vmatpush1.msra.mxu0 0.0
  %98 = vmatprep.subr.mxu0 0.0
  %99 = vmatpush1.msra.mxu0 0.0
  %100 = vmatprep.subr.mxu0 0.0
  %101 = vmatpush1.msra.mxu0 0.0
  %102 = vmatprep.subr.mxu0 0.0
  %103 = vmatpush1.msra.mxu0 0.0
  %104 = vmatprep.mubr.f32.mxu0 0.0
  %105 = vmatmul.mubr.f32.gmra.mrb[0].mxu0 %v29
  %v106 = vpop.f32.mrb[0].mxu0
  %v107 = vadd.f32 %v26, %v106
  %v108 = vpop.f32.mrb[0].mxu0
  %109 = vmatprep.mubr.f32.mxu0 0.0
  %110 = vmatmul.mubr.f32.gmra.mrb[0].mxu0 %v32
  %v111 = vpop.f32.mrb[0].mxu0
  %v112 = vadd.f32 %v26, %v111
  %v113 = vpop.f32.mrb[0].mxu0
  %114 = vmatprep.mubr.f32.mxu0 0.0
  %115 = vmatmul.mubr.f32.gmra.mrb[0].mxu0 %v35
  %v116 = vpop.f32.mrb[0].mxu0
  %v117 = vadd.f32 %v26, %v116
  %v118 = vpop.f32.mrb[0].mxu0
  %119 = vmatprep.mubr.f32.mxu0 0.0
  %120 = vmatmul.mubr.f32.gmra.mrb[0].mxu0 %v38
  %v121 = vpop.f32.mrb[0].mxu0
  %v122 = vadd.f32 %v26, %v121
  %v123 = vpop.f32.mrb[0].mxu0
  %124 = vdwg.mxu0
  %v125 = vmax.f32 %v107, 0.0
  %v126 = vmax.f32 %v112, 0.0
  %v127 = vmax.f32 %v117, 0.0
  %v128 = vmax.f32 %v122, 0.0
  %v129 = vld [vmem:[%s3 + $0x8] sm:$0xff]
  %v130 = vld [vmem:[%s3 + $0x10] sm:$0xff]
  %v131 = vld [vmem:[%s3 + $0x18] sm:$0xff]
  %v132 = vld [vmem:[%s3 + $0x20] sm:$0xff]
  %v133 = vld [vmem:[%s3 + $0x131] sm:$0x1]
  %v134 = vlaneseq
  %v135 = vshrl.u32 %v134, 7
  %v136 = vsub.s32 0, %v135
  %v137 = vrot.slane %v133, %v136
  %vm138 = vcmask 261120
  %v140 = vsel %vm138, %v125, 0
  %v143 = vsel %vm138, %v126, 0
  %v146 = vsel %vm138, %v127, 0
  %v149 = vsel %vm138, %v128, 0
  %151 = vmatprep.subr.mxu0 0.0
  %152 = vmatpush1.msra.mxu0 %v129
  %153 = vmatprep.subr.mxu0 0.0
  %154 = vmatpush1.msra.mxu0 %v130
  %155 = vmatprep.subr.mxu0 0.0
  %156 = vmatpush1.msra.mxu0 %v131
  %157 = vmatprep.subr.mxu0 0.0
  %158 = vmatpush1.msra.mxu0 %v132
  %159 = vmatprep.subr.mxu0 0.0
  %160 = vmatpush1.msra.mxu0 0.0
  %161 = vmatprep.subr.mxu0 0.0
  %162 = vmatpush1.msra.mxu0 0.0
  %163 = vmatprep.subr.mxu0 0.0
  %164 = vmatpush1.msra.mxu0 0.0
  %165 = vmatprep.subr.mxu0 0.0
  %166 = vmatpush1.msra.mxu0 0.0
  %167 = vmatprep.subr.mxu0 0.0
  %168 = vmatpush1.msra.mxu0 0.0
  %169 = vmatprep.subr.mxu0 0.0
  %170 = vmatpush1.msra.mxu0 0.0
  %171 = vmatprep.subr.mxu0 0.0
  %172 = vmatpush1.msra.mxu0 0.0
  %173 = vmatprep.subr.mxu0 0.0
  %174 = vmatpush1.msra.mxu0 0.0
  %175 = vmatprep.subr.mxu0 0.0
  %176 = vmatpush1.msra.mxu0 0.0
  %177 = vmatprep.subr.mxu0 0.0
  %178 = vmatpush1.msra.mxu0 0.0
  %179 = vmatprep.subr.mxu0 0.0
  %180 = vmatpush1.msra.mxu0 0.0
  %181 = vmatprep.subr.mxu0 0.0
  %182 = vmatpush1.msra.mxu0 0.0
  %183 = vmatprep.subr.mxu0 0.0
  %184 = vmatpush1.msra.mxu0 0.0
  %185 = vmatprep.subr.mxu0 0.0
  %186 = vmatpush1.msra.mxu0 0.0
  %187 = vmatprep.subr.mxu0 0.0
  %188 = vmatpush1.msra.mxu0 0.0
  %189 = vmatprep.subr.mxu0 0.0
  %190 = vmatpush1.msra.mxu0 0.0
  %191 = vmatprep.subr.mxu0 0.0
  %192 = vmatpush1.msra.mxu0 0.0
  %193 = vmatprep.subr.mxu0 0.0
  %194 = vmatpush1.msra.mxu0 0.0
  %195 = vmatprep.subr.mxu0 0.0
  %196 = vmatpush1.msra.mxu0 0.0
  %197 = vmatprep.subr.mxu0 0.0
  %198 = vmatpush1.msra.mxu0 0.0
  %199 = vmatprep.subr.mxu0 0.0
  %200 = vmatpush1.msra.mxu0 0.0
  %201 = vmatprep.subr.mxu0 0.0
  %202 = vmatpush1.msra.mxu0 0.0
  %203 = vmatprep.subr.mxu0 0.0
  %204 = vmatpush1.msra.mxu0 0.0
  %205 = vmatprep.subr.mxu0 0.0
  %206 = vmatpush1.msra.mxu0 0.0
  %207 = vmatprep.subr.mxu0 0.0
  %208 = vmatpush1.msra.mxu0 0.0
  %209 = vmatprep.subr.mxu0 0.0
  %210 = vmatpush1.msra.mxu0 0.0
  %211 = vmatprep.subr.mxu0 0.0
  %212 = vmatpush1.msra.mxu0 0.0
  %213 = vmatprep.subr.mxu0 0.0
  %214 = vmatpush1.msra.mxu0 0.0
  %215 = vmatprep.mubr.f32.mxu0 0.0
  %216 = vmatmul.mubr.f32.gmra.mrb[0].mxu0 %v140
  %v217 = vpop.f32.mrb[0].mxu0
  %v218 = vadd.f32 %v137, %v217
  %v219 = vpop.f32.mrb[0].mxu0
  %220 = vmatprep.mubr.f32.mxu0 0.0
  %221 = vmatmul.mubr.f32.gmra.mrb[0].mxu0 %v143
  %v222 = vpop.f32.mrb[0].mxu0
  %v223 = vadd.f32 %v137, %v222
  %v224 = vpop.f32.mrb[0].mxu0
  %225 = vmatprep.mubr.f32.mxu0 0.0
  %226 = vmatmul.mubr.f32.gmra.mrb[0].mxu0 %v146
  %v227 = vpop.f32.mrb[0].mxu0
  %v228 = vadd.f32 %v137, %v227
  %v229 = vpop.f32.mrb[0].mxu0
  %230 = vmatprep.mubr.f32.mxu0 0.0
  %231 = vmatmul.mubr.f32.gmra.mrb[0].mxu0 %v149
  %v232 = vpop.f32.mrb[0].mxu0
  %v233 = vadd.f32 %v137, %v232
  %v234 = vpop.f32.mrb[0].mxu0
  %235 = vdwg.mxu0
  %v236 = vld [vmem:[%s0] sm:$0xff]
  %v237 = vld [vmem:[%s0 + $0x8] sm:$0xff]
  %v238 = vld [vmem:[%s0 + $0x10] sm:$0xff]
  %v239 = vld [vmem:[%s0 + $0x18] sm:$0xff]
  %v240 = vld [vmem:[%s0 + $0x20] sm:$0xff]
  %v241 = vld [vmem:[%s0 + $0x28] sm:$0xff]
  %v242 = vld [vmem:[%s0 + $0x30] sm:$0xff]
  %v243 = vld [vmem:[%s0 + $0x38] sm:$0xff]
  %v244 = vld [vmem:[%s0 + $0x40] sm:$0xff]
  %v245 = vld [vmem:[%s0 + $0x48] sm:$0xff]
  %v246 = vld [vmem:[%s0 + $0x50] sm:$0xff]
  %v247 = vld [vmem:[%s0 + $0x58] sm:$0xff]
  %v248 = vld [vmem:[%s0 + $0x60] sm:$0xff]
  %v249 = vld [vmem:[%s0 + $0x68] sm:$0xff]
  %v250 = vld [vmem:[%s0 + $0x70] sm:$0xff]
  %v251 = vld [vmem:[%s0 + $0x78] sm:$0xff]
  %v252 = vlaneseq
  %v253 = vand.u32 %v252, 127
  %254 = vset.pattern.permute.xlu0 0
  %255 = vperm.xlu0 %254, %v236
  %v256 = vpop.permute.xlu0 %255
  %257 = vset.pattern.permute.xlu0 0
  %258 = vperm.xlu0 %257, %v237
  %v259 = vpop.permute.xlu0 %258
  %260 = vset.pattern.permute.xlu0 0
  %261 = vperm.xlu0 %260, %v238
  %v262 = vpop.permute.xlu0 %261
  %263 = vset.pattern.permute.xlu0 0
  %264 = vperm.xlu0 %263, %v239
  %v265 = vpop.permute.xlu0 %264
  %266 = vset.pattern.permute.xlu0 0
  %267 = vperm.xlu0 %266, %v240
  %v268 = vpop.permute.xlu0 %267
  %269 = vset.pattern.permute.xlu0 0
  %270 = vperm.xlu0 %269, %v241
  %v271 = vpop.permute.xlu0 %270
  %272 = vset.pattern.permute.xlu0 0
  %273 = vperm.xlu0 %272, %v242
  %v274 = vpop.permute.xlu0 %273
  %275 = vset.pattern.permute.xlu0 0
  %276 = vperm.xlu0 %275, %v243
  %v277 = vpop.permute.xlu0 %276
  %278 = vset.pattern.permute.xlu0 0
  %279 = vperm.xlu0 %278, %v244
  %v280 = vpop.permute.xlu0 %279
  %281 = vset.pattern.permute.xlu0 0
  %282 = vperm.xlu0 %281, %v245
  %v283 = vpop.permute.xlu0 %282
  %284 = vset.pattern.permute.xlu0 0
  %285 = vperm.xlu0 %284, %v246
  %v286 = vpop.permute.xlu0 %285
  %287 = vset.pattern.permute.xlu0 0
  %288 = vperm.xlu0 %287, %v247
  %v289 = vpop.permute.xlu0 %288
  %290 = vset.pattern.permute.xlu0 0
  %291 = vperm.xlu0 %290, %v248
  %v292 = vpop.permute.xlu0 %291
  %293 = vset.pattern.permute.xlu0 0
  %294 = vperm.xlu0 %293, %v249
  %v295 = vpop.permute.xlu0 %294
  %296 = vset.pattern.permute.xlu0 0
  %297 = vperm.xlu0 %296, %v250
  %v298 = vpop.permute.xlu0 %297
  %299 = vset.pattern.permute.xlu0 0
  %300 = vperm.xlu0 %299, %v251
  %v301 = vpop.permute.xlu0 %300
  %vm302 = vcmp.eq.s32.totalorder %v253, %v256
  %vm303 = vcmp.eq.s32.totalorder %v253, %v259
  %vm304 = vcmp.eq.s32.totalorder %v253, %v262
  %vm305 = vcmp.eq.s32.totalorder %v253, %v265
  %vm306 = vcmp.eq.s32.totalorder %v253, %v268
  %vm307 = vcmp.eq.s32.totalorder %v253, %v271
  %vm308 = vcmp.eq.s32.totalorder %v253, %v274
  %vm309 = vcmp.eq.s32.totalorder %v253, %v277
  %vm310 = vcmp.eq.s32.totalorder %v253, %v280
  %vm311 = vcmp.eq.s32.totalorder %v253, %v283
  %vm312 = vcmp.eq.s32.totalorder %v253, %v286
  %vm313 = vcmp.eq.s32.totalorder %v253, %v289
  %vm314 = vcmp.eq.s32.totalorder %v253, %v292
  %vm315 = vcmp.eq.s32.totalorder %v253, %v295
  %vm316 = vcmp.eq.s32.totalorder %v253, %v298
  %vm317 = vcmp.eq.s32.totalorder %v253, %v301
  %v318 = vsel %vm302, 1, 0
  %v319 = vsel %vm303, 1, 0
  %v320 = vsel %vm304, 1, 0
  %v321 = vsel %vm305, 1, 0
  %v322 = vsel %vm306, 1, 0
  %v323 = vsel %vm307, 1, 0
  %v324 = vsel %vm308, 1, 0
  %v325 = vsel %vm309, 1, 0
  %v326 = vsel %vm310, 1, 0
  %v327 = vsel %vm311, 1, 0
  %v328 = vsel %vm312, 1, 0
  %v329 = vsel %vm313, 1, 0
  %v330 = vsel %vm314, 1, 0
  %v331 = vsel %vm315, 1, 0
  %v332 = vsel %vm316, 1, 0
  %v333 = vsel %vm317, 1, 0
  %v334 = vcvt.s32.f32 %v318
  %v335 = vcvt.s32.f32 %v319
  %v336 = vcvt.s32.f32 %v320
  %v337 = vcvt.s32.f32 %v321
  %v338 = vcvt.s32.f32 %v322
  %v339 = vcvt.s32.f32 %v323
  %v340 = vcvt.s32.f32 %v324
  %v341 = vcvt.s32.f32 %v325
  %v342 = vcvt.s32.f32 %v326
  %v343 = vcvt.s32.f32 %v327
  %v344 = vcvt.s32.f32 %v328
  %v345 = vcvt.s32.f32 %v329
  %v346 = vcvt.s32.f32 %v330
  %v347 = vcvt.s32.f32 %v331
  %v348 = vcvt.s32.f32 %v332
  %v349 = vcvt.s32.f32 %v333
  %v351 = vsel %vm138, %v334, 0
  %v354 = vsel %vm138, %v335, 0
  %v357 = vsel %vm138, %v336, 0
  %v360 = vsel %vm138, %v337, 0
  %v363 = vsel %vm138, %v338, 0
  %v366 = vsel %vm138, %v339, 0
  %v369 = vsel %vm138, %v340, 0
  %v372 = vsel %vm138, %v341, 0
  %v375 = vsel %vm138, %v342, 0
  %v378 = vsel %vm138, %v343, 0
  %v381 = vsel %vm138, %v344, 0
  %v384 = vsel %vm138, %v345, 0
  %v387 = vsel %vm138, %v346, 0
  %v390 = vsel %vm138, %v347, 0
  %v393 = vsel %vm138, %v348, 0
  %v396 = vsel %vm138, %v349, 0
  %398 = vmatprep.subr.mxu0 0.0
  %399 = vmatpush1.msra.mxu0 %v218
  %400 = vmatprep.subr.mxu0 0.0
  %401 = vmatpush1.msra.mxu0 %v223
  %402 = vmatprep.subr.mxu0 0.0
  %403 = vmatpush1.msra.mxu0 %v228
  %404 = vmatprep.subr.mxu0 0.0
  %405 = vmatpush1.msra.mxu0 %v233
  %406 = vmatprep.subr.mxu0 0.0
  %407 = vmatpush1.msra.mxu0 0.0
  %408 = vmatprep.subr.mxu0 0.0
  %409 = vmatpush1.msra.mxu0 0.0
  %410 = vmatprep.subr.mxu0 0.0
  %411 = vmatpush1.msra.mxu0 0.0
  %412 = vmatprep.subr.mxu0 0.0
  %413 = vmatpush1.msra.mxu0 0.0
  %414 = vmatprep.subr.mxu0 0.0
  %415 = vmatpush1.msra.mxu0 0.0
  %416 = vmatprep.subr.mxu0 0.0
  %417 = vmatpush1.msra.mxu0 0.0
  %418 = vmatprep.subr.mxu0 0.0
  %419 = vmatpush1.msra.mxu0 0.0
  %420 = vmatprep.subr.mxu0 0.0
  %421 = vmatpush1.msra.mxu0 0.0
  %422 = vmatprep.subr.mxu0 0.0
  %423 = vmatpush1.msra.mxu0 0.0
  %424 = vmatprep.subr.mxu0 0.0
  %425 = vmatpush1.msra.mxu0 0.0
  %426 = vmatprep.subr.mxu0 0.0
  %427 = vmatpush1.msra.mxu0 0.0
  %428 = vmatprep.subr.mxu0 0.0
  %429 = vmatpush1.msra.mxu0 0.0
  %430 = vmatprep.subr.mxu0 0.0
  %431 = vmatpush1.msra.mxu0 0.0
  %432 = vmatprep.subr.mxu0 0.0
  %433 = vmatpush1.msra.mxu0 0.0
  %434 = vmatprep.subr.mxu0 0.0
  %435 = vmatpush1.msra.mxu0 0.0
  %436 = vmatprep.subr.mxu0 0.0
  %437 = vmatpush1.msra.mxu0 0.0
  %438 = vmatprep.subr.mxu0 0.0
  %439 = vmatpush1.msra.mxu0 0.0
  %440 = vmatprep.subr.mxu0 0.0
  %441 = vmatpush1.msra.mxu0 0.0
  %442 = vmatprep.subr.mxu0 0.0
  %443 = vmatpush1.msra.mxu0 0.0
  %444 = vmatprep.subr.mxu0 0.0
  %445 = vmatpush1.msra.mxu0 0.0
  %446 = vmatprep.subr.mxu0 0.0
  %447 = vmatpush1.msra.mxu0 0.0
  %448 = vmatprep.subr.mxu0 0.0
  %449 = vmatpush1.msra.mxu0 0.0
  %450 = vmatprep.subr.mxu0 0.0
  %451 = vmatpush1.msra.mxu0 0.0
  %452 = vmatprep.subr.mxu0 0.0
  %453 = vmatpush1.msra.mxu0 0.0
  %454 = vmatprep.subr.mxu0 0.0
  %455 = vmatpush1.msra.mxu0 0.0
  %456 = vmatprep.subr.mxu0 0.0
  %457 = vmatpush1.msra.mxu0 0.0
  %458 = vmatprep.subr.mxu0 0.0
  %459 = vmatpush1.msra.mxu0 0.0
  %460 = vmatprep.subr.mxu0 0.0
  %461 = vmatpush1.msra.mxu0 0.0
  %462 = vmatprep.mubr.f32.mxu0 0.0
  %463 = vmatmul.mubr.f32.gmra.mrb[0].mxu0 %v351
  %v464 = vpop.f32.mrb[0].mxu0
  %v465 = vadd.f32 0.0, %v464
  %v466 = vpop.f32.mrb[0].mxu0
  %467 = vmatprep.mubr.f32.mxu0 0.0
  %468 = vmatmul.mubr.f32.gmra.mrb[0].mxu0 %v354
  %v469 = vpop.f32.mrb[0].mxu0
  %v470 = vadd.f32 0.0, %v469
  %v471 = vpop.f32.mrb[0].mxu0
  %472 = vmatprep.mubr.f32.mxu0 0.0
  %473 = vmatmul.mubr.f32.gmra.mrb[0].mxu0 %v357
  %v474 = vpop.f32.mrb[0].mxu0
  %v475 = vadd.f32 0.0, %v474
  %v476 = vpop.f32.mrb[0].mxu0
  %477 = vmatprep.mubr.f32.mxu0 0.0
  %478 = vmatmul.mubr.f32.gmra.mrb[0].mxu0 %v360
  %v479 = vpop.f32.mrb[0].mxu0
  %v480 = vadd.f32 0.0, %v479
  %v481 = vpop.f32.mrb[0].mxu0
  %482 = vmatprep.mubr.f32.mxu0 0.0
  %483 = vmatmul.mubr.f32.gmra.mrb[0].mxu0 %v363
  %v484 = vpop.f32.mrb[0].mxu0
  %v485 = vadd.f32 0.0, %v484
  %v486 = vpop.f32.mrb[0].mxu0
  %487 = vmatprep.mubr.f32.mxu0 0.0
  %488 = vmatmul.mubr.f32.gmra.mrb[0].mxu0 %v366
  %v489 = vpop.f32.mrb[0].mxu0
  %v490 = vadd.f32 0.0, %v489
  %v491 = vpop.f32.mrb[0].mxu0
  %492 = vmatprep.mubr.f32.mxu0 0.0
  %493 = vmatmul.mubr.f32.gmra.mrb[0].mxu0 %v369
  %v494 = vpop.f32.mrb[0].mxu0
  %v495 = vadd.f32 0.0, %v494
  %v496 = vpop.f32.mrb[0].mxu0
  %497 = vmatprep.mubr.f32.mxu0 0.0
  %498 = vmatmul.mubr.f32.gmra.mrb[0].mxu0 %v372
  %v499 = vpop.f32.mrb[0].mxu0
  %v500 = vadd.f32 0.0, %v499
  %v501 = vpop.f32.mrb[0].mxu0
  %502 = vmatprep.mubr.f32.mxu0 0.0
  %503 = vmatmul.mubr.f32.gmra.mrb[0].mxu0 %v375
  %v504 = vpop.f32.mrb[0].mxu0
  %v505 = vadd.f32 0.0, %v504
  %v506 = vpop.f32.mrb[0].mxu0
  %507 = vmatprep.mubr.f32.mxu0 0.0
  %508 = vmatmul.mubr.f32.gmra.mrb[0].mxu0 %v378
  %v509 = vpop.f32.mrb[0].mxu0
  %v510 = vadd.f32 0.0, %v509
  %v511 = vpop.f32.mrb[0].mxu0
  %512 = vmatprep.mubr.f32.mxu0 0.0
  %513 = vmatmul.mubr.f32.gmra.mrb[0].mxu0 %v381
  %v514 = vpop.f32.mrb[0].mxu0
  %v515 = vadd.f32 0.0, %v514
  %v516 = vpop.f32.mrb[0].mxu0
  %517 = vmatprep.mubr.f32.mxu0 0.0
  %518 = vmatmul.mubr.f32.gmra.mrb[0].mxu0 %v384
  %v519 = vpop.f32.mrb[0].mxu0
  %v520 = vadd.f32 0.0, %v519
  %v521 = vpop.f32.mrb[0].mxu0
  %522 = vmatprep.mubr.f32.mxu0 0.0
  %523 = vmatmul.mubr.f32.gmra.mrb[0].mxu0 %v387
  %v524 = vpop.f32.mrb[0].mxu0
  %v525 = vadd.f32 0.0, %v524
  %v526 = vpop.f32.mrb[0].mxu0
  %527 = vmatprep.mubr.f32.mxu0 0.0
  %528 = vmatmul.mubr.f32.gmra.mrb[0].mxu0 %v390
  %v529 = vpop.f32.mrb[0].mxu0
  %v530 = vadd.f32 0.0, %v529
  %v531 = vpop.f32.mrb[0].mxu0
  %532 = vmatprep.mubr.f32.mxu0 0.0
  %533 = vmatmul.mubr.f32.gmra.mrb[0].mxu0 %v393
  %v534 = vpop.f32.mrb[0].mxu0
  %v535 = vadd.f32 0.0, %v534
  %v536 = vpop.f32.mrb[0].mxu0
  %537 = vmatprep.mubr.f32.mxu0 0.0
  %538 = vmatmul.mubr.f32.gmra.mrb[0].mxu0 %v396
  %v539 = vpop.f32.mrb[0].mxu0
  %v540 = vadd.f32 0.0, %v539
  %v541 = vpop.f32.mrb[0].mxu0
  %542 = vdwg.mxu0
  %v543 = vld [vmem:[%s2] sm:$0xff]
  %v544 = vld [vmem:[%s2 + $0x8] sm:$0xff]
  %v545 = vld [vmem:[%s2 + $0x10] sm:$0xff]
  %v546 = vld [vmem:[%s2 + $0x18] sm:$0xff]
  %v547 = vld [vmem:[%s2 + $0x20] sm:$0xff]
  %v548 = vld [vmem:[%s2 + $0x28] sm:$0xff]
  %v549 = vld [vmem:[%s2 + $0x30] sm:$0xff]
  %v550 = vld [vmem:[%s2 + $0x38] sm:$0xff]
  %v551 = vld [vmem:[%s3 + $0x28] sm:$0xff]
  %v552 = vld [vmem:[%s3 + $0x30] sm:$0xff]
  %v553 = vld [vmem:[%s3 + $0x38] sm:$0xff]
  %v554 = vld [vmem:[%s3 + $0x40] sm:$0xff]
  %v555 = vld [vmem:[%s3 + $0x48] sm:$0xff]
  %v557 = vsel %vm138, %v465, 0
  %v560 = vsel %vm138, %v470, 0
  %v563 = vsel %vm138, %v475, 0
  %v566 = vsel %vm138, %v480, 0
  %v569 = vsel %vm138, %v485, 0
  %v572 = vsel %vm138, %v490, 0
  %v575 = vsel %vm138, %v495, 0
  %v578 = vsel %vm138, %v500, 0
  %580 = vmatprep.subr.mxu0 0.0
  %581 = vmatpush1.msra.mxu0 %v552
  %582 = vmatprep.subr.mxu0 0.0
  %583 = vmatpush1.msra.mxu0 %v553
  %584 = vmatprep.subr.mxu0 0.0
  %585 = vmatpush1.msra.mxu0 %v554
  %586 = vmatprep.subr.mxu0 0.0
  %587 = vmatpush1.msra.mxu0 %v555
  %588 = vmatprep.subr.mxu0 0.0
  %589 = vmatpush1.msra.mxu0 0.0
  %590 = vmatprep.subr.mxu0 0.0
  %591 = vmatpush1.msra.mxu0 0.0
  %592 = vmatprep.subr.mxu0 0.0
  %593 = vmatpush1.msra.mxu0 0.0
  %594 = vmatprep.subr.mxu0 0.0
  %595 = vmatpush1.msra.mxu0 0.0
  %596 = vmatprep.subr.mxu0 0.0
  %597 = vmatpush1.msra.mxu0 0.0
  %598 = vmatprep.subr.mxu0 0.0
  %599 = vmatpush1.msra.mxu0 0.0
  %600 = vmatprep.subr.mxu0 0.0
  %601 = vmatpush1.msra.mxu0 0.0
  %602 = vmatprep.subr.mxu0 0.0
  %603 = vmatpush1.msra.mxu0 0.0
  %604 = vmatprep.subr.mxu0 0.0
  %605 = vmatpush1.msra.mxu0 0.0
  %606 = vmatprep.subr.mxu0 0.0
  %607 = vmatpush1.msra.mxu0 0.0
  %608 = vmatprep.subr.mxu0 0.0
  %609 = vmatpush1.msra.mxu0 0.0
  %610 = vmatprep.subr.mxu0 0.0
  %611 = vmatpush1.msra.mxu0 0.0
  %612 = vmatprep.subr.mxu0 0.0
  %613 = vmatpush1.msra.mxu0 0.0
  %614 = vmatprep.subr.mxu0 0.0
  %615 = vmatpush1.msra.mxu0 0.0
  %616 = vmatprep.subr.mxu0 0.0
  %617 = vmatpush1.msra.mxu0 0.0
  %618 = vmatprep.subr.mxu0 0.0
  %619 = vmatpush1.msra.mxu0 0.0
  %620 = vmatprep.subr.mxu0 0.0
  %621 = vmatpush1.msra.mxu0 0.0
  %622 = vmatprep.subr.mxu0 0.0
  %623 = vmatpush1.msra.mxu0 0.0
  %624 = vmatprep.subr.mxu0 0.0
  %625 = vmatpush1.msra.mxu0 0.0
  %626 = vmatprep.subr.mxu0 0.0
  %627 = vmatpush1.msra.mxu0 0.0
  %628 = vmatprep.subr.mxu0 0.0
  %629 = vmatpush1.msra.mxu0 0.0
  %630 = vmatprep.subr.mxu0 0.0
  %631 = vmatpush1.msra.mxu0 0.0
  %632 = vmatprep.subr.mxu0 0.0
  %633 = vmatpush1.msra.mxu0 0.0
  %634 = vmatprep.subr.mxu0 0.0
  %635 = vmatpush1.msra.mxu0 0.0
  %636 = vmatprep.subr.mxu0 0.0
  %637 = vmatpush1.msra.mxu0 0.0
  %638 = vmatprep.subr.mxu0 0.0
  %639 = vmatpush1.msra.mxu0 0.0
  %640 = vmatprep.subr.mxu0 0.0
  %641 = vmatpush1.msra.mxu0 0.0
  %642 = vmatprep.subr.mxu0 0.0
  %643 = vmatpush1.msra.mxu0 0.0
  %644 = vmatprep.mubr.f32.mxu0 0.0
  %645 = vmatmul.mubr.f32.gmra.mrb[0].mxu0 %v557
  %v646 = vpop.f32.mrb[0].mxu0
  %v647 = vadd.f32 0.0, %v646
  %v648 = vpop.f32.mrb[0].mxu0
  %649 = vmatprep.mubr.f32.mxu0 0.0
  %650 = vmatmul.mubr.f32.gmra.mrb[0].mxu0 %v560
  %v651 = vpop.f32.mrb[0].mxu0
  %v652 = vadd.f32 0.0, %v651
  %v653 = vpop.f32.mrb[0].mxu0
  %654 = vmatprep.mubr.f32.mxu0 0.0
  %655 = vmatmul.mubr.f32.gmra.mrb[0].mxu0 %v563
  %v656 = vpop.f32.mrb[0].mxu0
  %v657 = vadd.f32 0.0, %v656
  %v658 = vpop.f32.mrb[0].mxu0
  %659 = vmatprep.mubr.f32.mxu0 0.0
  %660 = vmatmul.mubr.f32.gmra.mrb[0].mxu0 %v566
  %v661 = vpop.f32.mrb[0].mxu0
  %v662 = vadd.f32 0.0, %v661
  %v663 = vpop.f32.mrb[0].mxu0
  %664 = vmatprep.mubr.f32.mxu0 0.0
  %665 = vmatmul.mubr.f32.gmra.mrb[0].mxu0 %v569
  %v666 = vpop.f32.mrb[0].mxu0
  %v667 = vadd.f32 0.0, %v666
  %v668 = vpop.f32.mrb[0].mxu0
  %669 = vmatprep.mubr.f32.mxu0 0.0
  %670 = vmatmul.mubr.f32.gmra.mrb[0].mxu0 %v572
  %v671 = vpop.f32.mrb[0].mxu0
  %v672 = vadd.f32 0.0, %v671
  %v673 = vpop.f32.mrb[0].mxu0
  %674 = vmatprep.mubr.f32.mxu0 0.0
  %675 = vmatmul.mubr.f32.gmra.mrb[0].mxu0 %v575
  %v676 = vpop.f32.mrb[0].mxu0
  %v677 = vadd.f32 0.0, %v676
  %v678 = vpop.f32.mrb[0].mxu0
  %679 = vmatprep.mubr.f32.mxu0 0.0
  %680 = vmatmul.mubr.f32.gmra.mrb[0].mxu0 %v578
  %v681 = vpop.f32.mrb[0].mxu0
  %v682 = vadd.f32 0.0, %v681
  %v683 = vpop.f32.mrb[0].mxu0
  %684 = vdwg.mxu0
  %v686 = vsel %vm27, %v543, 0
  %v689 = vsel %vm27, %v544, 0
  %v692 = vsel %vm27, %v545, 0
  %v695 = vsel %vm27, %v546, 0
  %v698 = vsel %vm27, %v547, 0
  %v701 = vsel %vm27, %v548, 0
  %v704 = vsel %vm27, %v549, 0
  %v707 = vsel %vm27, %v550, 0
  %709 = vmatprep.subr.mxu0 0.0
  %710 = vmatpush1.msra.mxu0 %v551
  %711 = vmatprep.subr.mxu0 0.0
  %712 = vmatpush1.msra.mxu0 0.0
  %713 = vmatprep.subr.mxu0 0.0
  %714 = vmatpush1.msra.mxu0 0.0
  %715 = vmatprep.subr.mxu0 0.0
  %716 = vmatpush1.msra.mxu0 0.0
  %717 = vmatprep.subr.mxu0 0.0
  %718 = vmatpush1.msra.mxu0 0.0
  %719 = vmatprep.subr.mxu0 0.0
  %720 = vmatpush1.msra.mxu0 0.0
  %721 = vmatprep.subr.mxu0 0.0
  %722 = vmatpush1.msra.mxu0 0.0
  %723 = vmatprep.subr.mxu0 0.0
  %724 = vmatpush1.msra.mxu0 0.0
  %725 = vmatprep.subr.mxu0 0.0
  %726 = vmatpush1.msra.mxu0 0.0
  %727 = vmatprep.subr.mxu0 0.0
  %728 = vmatpush1.msra.mxu0 0.0
  %729 = vmatprep.subr.mxu0 0.0
  %730 = vmatpush1.msra.mxu0 0.0
  %731 = vmatprep.subr.mxu0 0.0
  %732 = vmatpush1.msra.mxu0 0.0
  %733 = vmatprep.subr.mxu0 0.0
  %734 = vmatpush1.msra.mxu0 0.0
  %735 = vmatprep.subr.mxu0 0.0
  %736 = vmatpush1.msra.mxu0 0.0
  %737 = vmatprep.subr.mxu0 0.0
  %738 = vmatpush1.msra.mxu0 0.0
  %739 = vmatprep.subr.mxu0 0.0
  %740 = vmatpush1.msra.mxu0 0.0
  %741 = vmatprep.subr.mxu0 0.0
  %742 = vmatpush1.msra.mxu0 0.0
  %743 = vmatprep.subr.mxu0 0.0
  %744 = vmatpush1.msra.mxu0 0.0
  %745 = vmatprep.subr.mxu0 0.0
  %746 = vmatpush1.msra.mxu0 0.0
  %747 = vmatprep.subr.mxu0 0.0
  %748 = vmatpush1.msra.mxu0 0.0
  %749 = vmatprep.subr.mxu0 0.0
  %750 = vmatpush1.msra.mxu0 0.0
  %751 = vmatprep.subr.mxu0 0.0
  %752 = vmatpush1.msra.mxu0 0.0
  %753 = vmatprep.subr.mxu0 0.0
  %754 = vmatpush1.msra.mxu0 0.0
  %755 = vmatprep.subr.mxu0 0.0
  %756 = vmatpush1.msra.mxu0 0.0
  %757 = vmatprep.subr.mxu0 0.0
  %758 = vmatpush1.msra.mxu0 0.0
  %759 = vmatprep.subr.mxu0 0.0
  %760 = vmatpush1.msra.mxu0 0.0
  %761 = vmatprep.subr.mxu0 0.0
  %762 = vmatpush1.msra.mxu0 0.0
  %763 = vmatprep.subr.mxu0 0.0
  %764 = vmatpush1.msra.mxu0 0.0
  %765 = vmatprep.subr.mxu0 0.0
  %766 = vmatpush1.msra.mxu0 0.0
  %767 = vmatprep.subr.mxu0 0.0
  %768 = vmatpush1.msra.mxu0 0.0
  %769 = vmatprep.subr.mxu0 0.0
  %770 = vmatpush1.msra.mxu0 0.0
  %771 = vmatprep.subr.mxu0 0.0
  %772 = vmatpush1.msra.mxu0 0.0
  %773 = vmatprep.mubr.f32.mxu0 0.0
  %774 = vmatmul.mubr.f32.gmra.mrb[0].mxu0 %v686
  %v775 = vpop.f32.mrb[0].mxu0
  %v776 = vadd.f32 %v647, %v775
  %v777 = vpop.f32.mrb[0].mxu0
  %778 = vmatprep.mubr.f32.mxu0 0.0
  %779 = vmatmul.mubr.f32.gmra.mrb[0].mxu0 %v689
  %v780 = vpop.f32.mrb[0].mxu0
  %v781 = vadd.f32 %v652, %v780
  %v782 = vpop.f32.mrb[0].mxu0
  %783 = vmatprep.mubr.f32.mxu0 0.0
  %784 = vmatmul.mubr.f32.gmra.mrb[0].mxu0 %v692
  %v785 = vpop.f32.mrb[0].mxu0
  %v786 = vadd.f32 %v657, %v785
  %v787 = vpop.f32.mrb[0].mxu0
  %788 = vmatprep.mubr.f32.mxu0 0.0
  %789 = vmatmul.mubr.f32.gmra.mrb[0].mxu0 %v695
  %v790 = vpop.f32.mrb[0].mxu0
  %v791 = vadd.f32 %v662, %v790
  %v792 = vpop.f32.mrb[0].mxu0
  %793 = vmatprep.mubr.f32.mxu0 0.0
  %794 = vmatmul.mubr.f32.gmra.mrb[0].mxu0 %v698
  %v795 = vpop.f32.mrb[0].mxu0
  %v796 = vadd.f32 %v667, %v795
  %v797 = vpop.f32.mrb[0].mxu0
  %798 = vmatprep.mubr.f32.mxu0 0.0
  %799 = vmatmul.mubr.f32.gmra.mrb[0].mxu0 %v701
  %v800 = vpop.f32.mrb[0].mxu0
  %v801 = vadd.f32 %v672, %v800
  %v802 = vpop.f32.mrb[0].mxu0
  %803 = vmatprep.mubr.f32.mxu0 0.0
  %804 = vmatmul.mubr.f32.gmra.mrb[0].mxu0 %v704
  %v805 = vpop.f32.mrb[0].mxu0
  %v806 = vadd.f32 %v677, %v805
  %v807 = vpop.f32.mrb[0].mxu0
  %808 = vmatprep.mubr.f32.mxu0 0.0
  %809 = vmatmul.mubr.f32.gmra.mrb[0].mxu0 %v707
  %v810 = vpop.f32.mrb[0].mxu0
  %v811 = vadd.f32 %v682, %v810
  %v812 = vpop.f32.mrb[0].mxu0
  %813 = vdwg.mxu0
  %v814 = vld [vmem:[%s3 + $0x50] sm:$0xff]
  %v815 = vld [vmem:[%s3 + $0x58] sm:$0xff]
  %v816 = vld [vmem:[%s3 + $0x60] sm:$0xff]
  %v817 = vld [vmem:[%s3 + $0x68] sm:$0xff]
  %v819 = vsel %vm138, %v505, 0
  %v822 = vsel %vm138, %v510, 0
  %v825 = vsel %vm138, %v515, 0
  %v828 = vsel %vm138, %v520, 0
  %v831 = vsel %vm138, %v525, 0
  %v834 = vsel %vm138, %v530, 0
  %v837 = vsel %vm138, %v535, 0
  %v840 = vsel %vm138, %v540, 0
  %842 = vmatprep.subr.mxu0 0.0
  %843 = vmatpush1.msra.mxu0 %v814
  %844 = vmatprep.subr.mxu0 0.0
  %845 = vmatpush1.msra.mxu0 %v815
  %846 = vmatprep.subr.mxu0 0.0
  %847 = vmatpush1.msra.mxu0 %v816
  %848 = vmatprep.subr.mxu0 0.0
  %849 = vmatpush1.msra.mxu0 %v817
  %850 = vmatprep.subr.mxu0 0.0
  %851 = vmatpush1.msra.mxu0 0.0
  %852 = vmatprep.subr.mxu0 0.0
  %853 = vmatpush1.msra.mxu0 0.0
  %854 = vmatprep.subr.mxu0 0.0
  %855 = vmatpush1.msra.mxu0 0.0
  %856 = vmatprep.subr.mxu0 0.0
  %857 = vmatpush1.msra.mxu0 0.0
  %858 = vmatprep.subr.mxu0 0.0
  %859 = vmatpush1.msra.mxu0 0.0
  %860 = vmatprep.subr.mxu0 0.0
  %861 = vmatpush1.msra.mxu0 0.0
  %862 = vmatprep.subr.mxu0 0.0
  %863 = vmatpush1.msra.mxu0 0.0
  %864 = vmatprep.subr.mxu0 0.0
  %865 = vmatpush1.msra.mxu0 0.0
  %866 = vmatprep.subr.mxu0 0.0
  %867 = vmatpush1.msra.mxu0 0.0
  %868 = vmatprep.subr.mxu0 0.0
  %869 = vmatpush1.msra.mxu0 0.0
  %870 = vmatprep.subr.mxu0 0.0
  %871 = vmatpush1.msra.mxu0 0.0
  %872 = vmatprep.subr.mxu0 0.0
  %873 = vmatpush1.msra.mxu0 0.0
  %874 = vmatprep.subr.mxu0 0.0
  %875 = vmatpush1.msra.mxu0 0.0
  %876 = vmatprep.subr.mxu0 0.0
  %877 = vmatpush1.msra.mxu0 0.0
  %878 = vmatprep.subr.mxu0 0.0
  %879 = vmatpush1.msra.mxu0 0.0
  %880 = vmatprep.subr.mxu0 0.0
  %881 = vmatpush1.msra.mxu0 0.0
  %882 = vmatprep.subr.mxu0 0.0
  %883 = vmatpush1.msra.mxu0 0.0
  %884 = vmatprep.subr.mxu0 0.0
  %885 = vmatpush1.msra.mxu0 0.0
  %886 = vmatprep.subr.mxu0 0.0
  %887 = vmatpush1.msra.mxu0 0.0
  %888 = vmatprep.subr.mxu0 0.0
  %889 = vmatpush1.msra.mxu0 0.0
  %890 = vmatprep.subr.mxu0 0.0
  %891 = vmatpush1.msra.mxu0 0.0
  %892 = vmatprep.subr.mxu0 0.0
  %893 = vmatpush1.msra.mxu0 0.0
  %894 = vmatprep.subr.mxu0 0.0
  %895 = vmatpush1.msra.mxu0 0.0
  %896 = vmatprep.subr.mxu0 0.0
  %897 = vmatpush1.msra.mxu0 0.0
  %898 = vmatprep.subr.mxu0 0.0
  %899 = vmatpush1.msra.mxu0 0.0
  %900 = vmatprep.subr.mxu0 0.0
  %901 = vmatpush1.msra.mxu0 0.0
  %902 = vmatprep.subr.mxu0 0.0
  %903 = vmatpush1.msra.mxu0 0.0
  %904 = vmatprep.subr.mxu0 0.0
  %905 = vmatpush1.msra.mxu0 0.0
  %906 = vmatprep.mubr.f32.mxu0 0.0
  %907 = vmatmul.mubr.f32.gmra.mrb[0].mxu0 %v819
  %v908 = vpop.f32.mrb[0].mxu0
  %v909 = vadd.f32 0.0, %v908
  %v910 = vpop.f32.mrb[0].mxu0
  %911 = vmatprep.mubr.f32.mxu0 0.0
  %912 = vmatmul.mubr.f32.gmra.mrb[0].mxu0 %v822
  %v913 = vpop.f32.mrb[0].mxu0
  %v914 = vadd.f32 0.0, %v913
  %v915 = vpop.f32.mrb[0].mxu0
  %916 = vmatprep.mubr.f32.mxu0 0.0
  %917 = vmatmul.mubr.f32.gmra.mrb[0].mxu0 %v825
  %v918 = vpop.f32.mrb[0].mxu0
  %v919 = vadd.f32 0.0, %v918
  %v920 = vpop.f32.mrb[0].mxu0
  %921 = vmatprep.mubr.f32.mxu0 0.0
  %922 = vmatmul.mubr.f32.gmra.mrb[0].mxu0 %v828
  %v923 = vpop.f32.mrb[0].mxu0
  %v924 = vadd.f32 0.0, %v923
  %v925 = vpop.f32.mrb[0].mxu0
  %926 = vmatprep.mubr.f32.mxu0 0.0
  %927 = vmatmul.mubr.f32.gmra.mrb[0].mxu0 %v831
  %v928 = vpop.f32.mrb[0].mxu0
  %v929 = vadd.f32 0.0, %v928
  %v930 = vpop.f32.mrb[0].mxu0
  %931 = vmatprep.mubr.f32.mxu0 0.0
  %932 = vmatmul.mubr.f32.gmra.mrb[0].mxu0 %v834
  %v933 = vpop.f32.mrb[0].mxu0
  %v934 = vadd.f32 0.0, %v933
  %v935 = vpop.f32.mrb[0].mxu0
  %936 = vmatprep.mubr.f32.mxu0 0.0
  %937 = vmatmul.mubr.f32.gmra.mrb[0].mxu0 %v837
  %v938 = vpop.f32.mrb[0].mxu0
  %v939 = vadd.f32 0.0, %v938
  %v940 = vpop.f32.mrb[0].mxu0
  %941 = vmatprep.mubr.f32.mxu0 0.0
  %942 = vmatmul.mubr.f32.gmra.mrb[0].mxu0 %v840
  %v943 = vpop.f32.mrb[0].mxu0
  %v944 = vadd.f32 0.0, %v943
  %v945 = vpop.f32.mrb[0].mxu0
  %946 = vdwg.mxu0
  %v947 = vadd.f32 %v776, %v909
  %v948 = vadd.f32 %v781, %v914
  %v949 = vadd.f32 %v786, %v919
  %v950 = vadd.f32 %v791, %v924
  %v951 = vadd.f32 %v796, %v929
  %v952 = vadd.f32 %v801, %v934
  %v953 = vadd.f32 %v806, %v939
  %v954 = vadd.f32 %v811, %v944
  %v955 = vld [vmem:[%s3 + $0x132] sm:$0x1]
  %v956 = vlaneseq
  %v957 = vshrl.u32 %v956, 7
  %v958 = vsub.s32 0, %v957
  %v959 = vrot.slane %v955, %v958
  %v960 = vadd.f32 %v947, %v959
  %v961 = vadd.f32 %v948, %v959
  %v962 = vadd.f32 %v949, %v959
  %v963 = vadd.f32 %v950, %v959
  %v964 = vadd.f32 %v951, %v959
  %v965 = vadd.f32 %v952, %v959
  %v966 = vadd.f32 %v953, %v959
  %v967 = vadd.f32 %v954, %v959
  %v968 = vmax.f32 %v960, 0.0
  %v969 = vmax.f32 %v961, 0.0
  %v970 = vmax.f32 %v962, 0.0
  %v971 = vmax.f32 %v963, 0.0
  %v972 = vmax.f32 %v964, 0.0
  %v973 = vmax.f32 %v965, 0.0
  %v974 = vmax.f32 %v966, 0.0
  %v975 = vmax.f32 %v967, 0.0
  %v976 = vld [vmem:[%s3 + $0x70] sm:$0xff]
  %v977 = vld [vmem:[%s3 + $0x78] sm:$0xff]
  %v978 = vld [vmem:[%s3 + $0x80] sm:$0xff]
  %v979 = vld [vmem:[%s3 + $0x88] sm:$0xff]
  %v980 = vld [vmem:[%s3 + $0x133] sm:$0x1]
  %v981 = vlaneseq
  %v982 = vshrl.u32 %v981, 7
  %v983 = vsub.s32 0, %v982
  %v984 = vrot.slane %v980, %v983
  %v986 = vsel %vm138, %v968, 0
  %v989 = vsel %vm138, %v969, 0
  %v992 = vsel %vm138, %v970, 0
  %v995 = vsel %vm138, %v971, 0
  %v998 = vsel %vm138, %v972, 0
  %v1001 = vsel %vm138, %v973, 0
  %v1004 = vsel %vm138, %v974, 0
  %v1007 = vsel %vm138, %v975, 0
  %1009 = vmatprep.subr.mxu0 0.0
  %1010 = vmatpush1.msra.mxu0 %v976
  %1011 = vmatprep.subr.mxu0 0.0
  %1012 = vmatpush1.msra.mxu0 %v977
  %1013 = vmatprep.subr.mxu0 0.0
  %1014 = vmatpush1.msra.mxu0 %v978
  %1015 = vmatprep.subr.mxu0 0.0
  %1016 = vmatpush1.msra.mxu0 %v979
  %1017 = vmatprep.subr.mxu0 0.0
  %1018 = vmatpush1.msra.mxu0 0.0
  %1019 = vmatprep.subr.mxu0 0.0
  %1020 = vmatpush1.msra.mxu0 0.0
  %1021 = vmatprep.subr.mxu0 0.0
  %1022 = vmatpush1.msra.mxu0 0.0
  %1023 = vmatprep.subr.mxu0 0.0
  %1024 = vmatpush1.msra.mxu0 0.0
  %1025 = vmatprep.subr.mxu0 0.0
  %1026 = vmatpush1.msra.mxu0 0.0
  %1027 = vmatprep.subr.mxu0 0.0
  %1028 = vmatpush1.msra.mxu0 0.0
  %1029 = vmatprep.subr.mxu0 0.0
  %1030 = vmatpush1.msra.mxu0 0.0
  %1031 = vmatprep.subr.mxu0 0.0
  %1032 = vmatpush1.msra.mxu0 0.0
  %1033 = vmatprep.subr.mxu0 0.0
  %1034 = vmatpush1.msra.mxu0 0.0
  %1035 = vmatprep.subr.mxu0 0.0
  %1036 = vmatpush1.msra.mxu0 0.0
  %1037 = vmatprep.subr.mxu0 0.0
  %1038 = vmatpush1.msra.mxu0 0.0
  %1039 = vmatprep.subr.mxu0 0.0
  %1040 = vmatpush1.msra.mxu0 0.0
  %1041 = vmatprep.subr.mxu0 0.0
  %1042 = vmatpush1.msra.mxu0 0.0
  %1043 = vmatprep.subr.mxu0 0.0
  %1044 = vmatpush1.msra.mxu0 0.0
  %1045 = vmatprep.subr.mxu0 0.0
  %1046 = vmatpush1.msra.mxu0 0.0
  %1047 = vmatprep.subr.mxu0 0.0
  %1048 = vmatpush1.msra.mxu0 0.0
  %1049 = vmatprep.subr.mxu0 0.0
  %1050 = vmatpush1.msra.mxu0 0.0
  %1051 = vmatprep.subr.mxu0 0.0
  %1052 = vmatpush1.msra.mxu0 0.0
  %1053 = vmatprep.subr.mxu0 0.0
  %1054 = vmatpush1.msra.mxu0 0.0
  %1055 = vmatprep.subr.mxu0 0.0
  %1056 = vmatpush1.msra.mxu0 0.0
  %1057 = vmatprep.subr.mxu0 0.0
  %1058 = vmatpush1.msra.mxu0 0.0
  %1059 = vmatprep.subr.mxu0 0.0
  %1060 = vmatpush1.msra.mxu0 0.0
  %1061 = vmatprep.subr.mxu0 0.0
  %1062 = vmatpush1.msra.mxu0 0.0
  %1063 = vmatprep.subr.mxu0 0.0
  %1064 = vmatpush1.msra.mxu0 0.0
  %1065 = vmatprep.subr.mxu0 0.0
  %1066 = vmatpush1.msra.mxu0 0.0
  %1067 = vmatprep.subr.mxu0 0.0
  %1068 = vmatpush1.msra.mxu0 0.0
  %1069 = vmatprep.subr.mxu0 0.0
  %1070 = vmatpush1.msra.mxu0 0.0
  %1071 = vmatprep.subr.mxu0 0.0
  %1072 = vmatpush1.msra.mxu0 0.0
  %1073 = vmatprep.mubr.f32.mxu0 0.0
  %1074 = vmatmul.mubr.f32.gmra.mrb[0].mxu0 %v986
  %v1075 = vpop.f32.mrb[0].mxu0
  %v1076 = vadd.f32 %v984, %v1075
  %v1077 = vpop.f32.mrb[0].mxu0
  %1078 = vmatprep.mubr.f32.mxu0 0.0
  %1079 = vmatmul.mubr.f32.gmra.mrb[0].mxu0 %v989
  %v1080 = vpop.f32.mrb[0].mxu0
  %v1081 = vadd.f32 %v984, %v1080
  %v1082 = vpop.f32.mrb[0].mxu0
  %1083 = vmatprep.mubr.f32.mxu0 0.0
  %1084 = vmatmul.mubr.f32.gmra.mrb[0].mxu0 %v992
  %v1085 = vpop.f32.mrb[0].mxu0
  %v1086 = vadd.f32 %v984, %v1085
  %v1087 = vpop.f32.mrb[0].mxu0
  %1088 = vmatprep.mubr.f32.mxu0 0.0
  %1089 = vmatmul.mubr.f32.gmra.mrb[0].mxu0 %v995
  %v1090 = vpop.f32.mrb[0].mxu0
  %v1091 = vadd.f32 %v984, %v1090
  %v1092 = vpop.f32.mrb[0].mxu0
  %1093 = vmatprep.mubr.f32.mxu0 0.0
  %1094 = vmatmul.mubr.f32.gmra.mrb[0].mxu0 %v998
  %v1095 = vpop.f32.mrb[0].mxu0
  %v1096 = vadd.f32 %v984, %v1095
  %v1097 = vpop.f32.mrb[0].mxu0
  %1098 = vmatprep.mubr.f32.mxu0 0.0
  %1099 = vmatmul.mubr.f32.gmra.mrb[0].mxu0 %v1001
  %v1100 = vpop.f32.mrb[0].mxu0
  %v1101 = vadd.f32 %v984, %v1100
  %v1102 = vpop.f32.mrb[0].mxu0
  %1103 = vmatprep.mubr.f32.mxu0 0.0
  %1104 = vmatmul.mubr.f32.gmra.mrb[0].mxu0 %v1004
  %v1105 = vpop.f32.mrb[0].mxu0
  %v1106 = vadd.f32 %v984, %v1105
  %v1107 = vpop.f32.mrb[0].mxu0
  %1108 = vmatprep.mubr.f32.mxu0 0.0
  %1109 = vmatmul.mubr.f32.gmra.mrb[0].mxu0 %v1007
  %v1110 = vpop.f32.mrb[0].mxu0
  %v1111 = vadd.f32 %v984, %v1110
  %v1112 = vpop.f32.mrb[0].mxu0
  %1113 = vdwg.mxu0
  %1114 = vxpose.xlu0.b32.start [1/16] %v342, 128
  %1115 = vxpose.xlu0.b32.cont [2/16] %v343, 128
  %1116 = vxpose.xlu0.b32.cont [3/16] %v344, 128
  %1117 = vxpose.xlu0.b32.cont [4/16] %v345, 128
  %1118 = vxpose.xlu0.b32.cont [5/16] %v346, 128
  %1119 = vxpose.xlu0.b32.cont [6/16] %v347, 128
  %1120 = vxpose.xlu0.b32.cont [7/16] %v348, 128
  %1121 = vxpose.xlu0.b32.cont [8/16] %v349, 128
  %1122 = vxpose.xlu0.b32.cont [9/16] 0.0, 128
  %1123 = vxpose.xlu0.b32.cont [10/16] 0.0, 128
  %1124 = vxpose.xlu0.b32.cont [11/16] 0.0, 128
  %1125 = vxpose.xlu0.b32.cont [12/16] 0.0, 128
  %1126 = vxpose.xlu0.b32.cont [13/16] 0.0, 128
  %1127 = vxpose.xlu0.b32.cont [14/16] 0.0, 128
  %1128 = vxpose.xlu0.b32.cont [15/16] 0.0, 128
  %1129 = vxpose.xlu0.b32.end [16/16] 0.0, 128
  %v1130 = vpop.trf.xlu0
  %v1131 = vpop.trf.xlu0
  %v1132 = vpop.trf.xlu0
  %v1133 = vpop.trf.xlu0
  %v1134 = vpop.trf.xlu0
  %v1135 = vpop.trf.xlu0
  %v1136 = vpop.trf.xlu0
  %v1137 = vpop.trf.xlu0
  %v1138 = vpop.trf.xlu0
  %v1139 = vpop.trf.xlu0
  %v1140 = vpop.trf.xlu0
  %v1141 = vpop.trf.xlu0
  %v1142 = vpop.trf.xlu0
  %v1143 = vpop.trf.xlu0
  %v1144 = vpop.trf.xlu0
  %v1145 = vpop.trf.xlu0
  %vm1146 = vcmask 523264
  %v1148 = vsel %vm1146, %v1130, 0
  %v1151 = vsel %vm1146, %v1131, 0
  %v1154 = vsel %vm1146, %v1132, 0
  %v1157 = vsel %vm1146, %v1133, 0
  %1159 = vmatprep.subr.mxu0 0.0
  %1160 = vmatpush1.msra.mxu0 %v1076
  %1161 = vmatprep.subr.mxu0 0.0
  %1162 = vmatpush1.msra.mxu0 %v1081
  %1163 = vmatprep.subr.mxu0 0.0
  %1164 = vmatpush1.msra.mxu0 %v1086
  %1165 = vmatprep.subr.mxu0 0.0
  %1166 = vmatpush1.msra.mxu0 %v1091
  %1167 = vmatprep.subr.mxu0 0.0
  %1168 = vmatpush1.msra.mxu0 %v1096
  %1169 = vmatprep.subr.mxu0 0.0
  %1170 = vmatpush1.msra.mxu0 %v1101
  %1171 = vmatprep.subr.mxu0 0.0
  %1172 = vmatpush1.msra.mxu0 %v1106
  %1173 = vmatprep.subr.mxu0 0.0
  %1174 = vmatpush1.msra.mxu0 %v1111
  %1175 = vmatprep.subr.mxu0 0.0
  %1176 = vmatpush1.msra.mxu0 0.0
  %1177 = vmatprep.subr.mxu0 0.0
  %1178 = vmatpush1.msra.mxu0 0.0
  %1179 = vmatprep.subr.mxu0 0.0
  %1180 = vmatpush1.msra.mxu0 0.0
  %1181 = vmatprep.subr.mxu0 0.0
  %1182 = vmatpush1.msra.mxu0 0.0
  %1183 = vmatprep.subr.mxu0 0.0
  %1184 = vmatpush1.msra.mxu0 0.0
  %1185 = vmatprep.subr.mxu0 0.0
  %1186 = vmatpush1.msra.mxu0 0.0
  %1187 = vmatprep.subr.mxu0 0.0
  %1188 = vmatpush1.msra.mxu0 0.0
  %1189 = vmatprep.subr.mxu0 0.0
  %1190 = vmatpush1.msra.mxu0 0.0
  %1191 = vmatprep.subr.mxu0 0.0
  %1192 = vmatpush1.msra.mxu0 0.0
  %1193 = vmatprep.subr.mxu0 0.0
  %1194 = vmatpush1.msra.mxu0 0.0
  %1195 = vmatprep.subr.mxu0 0.0
  %1196 = vmatpush1.msra.mxu0 0.0
  %1197 = vmatprep.subr.mxu0 0.0
  %1198 = vmatpush1.msra.mxu0 0.0
  %1199 = vmatprep.subr.mxu0 0.0
  %1200 = vmatpush1.msra.mxu0 0.0
  %1201 = vmatprep.subr.mxu0 0.0
  %1202 = vmatpush1.msra.mxu0 0.0
  %1203 = vmatprep.subr.mxu0 0.0
  %1204 = vmatpush1.msra.mxu0 0.0
  %1205 = vmatprep.subr.mxu0 0.0
  %1206 = vmatpush1.msra.mxu0 0.0
  %1207 = vmatprep.subr.mxu0 0.0
  %1208 = vmatpush1.msra.mxu0 0.0
  %1209 = vmatprep.subr.mxu0 0.0
  %1210 = vmatpush1.msra.mxu0 0.0
  %1211 = vmatprep.subr.mxu0 0.0
  %1212 = vmatpush1.msra.mxu0 0.0
  %1213 = vmatprep.subr.mxu0 0.0
  %1214 = vmatpush1.msra.mxu0 0.0
  %1215 = vmatprep.subr.mxu0 0.0
  %1216 = vmatpush1.msra.mxu0 0.0
  %1217 = vmatprep.subr.mxu0 0.0
  %1218 = vmatpush1.msra.mxu0 0.0
  %1219 = vmatprep.subr.mxu0 0.0
  %1220 = vmatpush1.msra.mxu0 0.0
  %1221 = vmatprep.subr.mxu0 0.0
  %1222 = vmatpush1.msra.mxu0 0.0
  %1223 = vmatprep.mubr.f32.mxu0 0.0
  %1224 = vmatmul.mubr.f32.gmra.mrb[0].mxu0 %v1148
  %v1225 = vpop.f32.mrb[0].mxu0
  %v1226 = vadd.f32 0.0, %v1225
  %v1227 = vpop.f32.mrb[0].mxu0
  %1228 = vmatprep.mubr.f32.mxu0 0.0
  %1229 = vmatmul.mubr.f32.gmra.mrb[0].mxu0 %v1151
  %v1230 = vpop.f32.mrb[0].mxu0
  %v1231 = vadd.f32 0.0, %v1230
  %v1232 = vpop.f32.mrb[0].mxu0
  %1233 = vmatprep.mubr.f32.mxu0 0.0
  %1234 = vmatmul.mubr.f32.gmra.mrb[0].mxu0 %v1154
  %v1235 = vpop.f32.mrb[0].mxu0
  %v1236 = vadd.f32 0.0, %v1235
  %v1237 = vpop.f32.mrb[0].mxu0
  %1238 = vmatprep.mubr.f32.mxu0 0.0
  %1239 = vmatmul.mubr.f32.gmra.mrb[0].mxu0 %v1157
  %v1240 = vpop.f32.mrb[0].mxu0
  %v1241 = vadd.f32 0.0, %v1240
  %v1242 = vpop.f32.mrb[0].mxu0
  %1243 = vdwg.mxu0
  %1244 = vmatprep.subr.mxu0 0.0
  %1245 = vmatpush1.msra.mxu0 1.0
  %1246 = vmatprep.subr.mxu0 0.0
  %1247 = vmatpush1.msra.mxu0 1.0
  %1248 = vmatprep.subr.mxu0 0.0
  %1249 = vmatpush1.msra.mxu0 1.0
  %1250 = vmatprep.subr.mxu0 0.0
  %1251 = vmatpush1.msra.mxu0 1.0
  %1252 = vmatprep.subr.mxu0 0.0
  %1253 = vmatpush1.msra.mxu0 1.0
  %1254 = vmatprep.subr.mxu0 0.0
  %1255 = vmatpush1.msra.mxu0 1.0
  %1256 = vmatprep.subr.mxu0 0.0
  %1257 = vmatpush1.msra.mxu0 1.0
  %1258 = vmatprep.subr.mxu0 0.0
  %1259 = vmatpush1.msra.mxu0 1.0
  %1260 = vmatprep.subr.mxu0 0.0
  %1261 = vmatpush1.msra.mxu0 0.0
  %1262 = vmatprep.subr.mxu0 0.0
  %1263 = vmatpush1.msra.mxu0 0.0
  %1264 = vmatprep.subr.mxu0 0.0
  %1265 = vmatpush1.msra.mxu0 0.0
  %1266 = vmatprep.subr.mxu0 0.0
  %1267 = vmatpush1.msra.mxu0 0.0
  %1268 = vmatprep.subr.mxu0 0.0
  %1269 = vmatpush1.msra.mxu0 0.0
  %1270 = vmatprep.subr.mxu0 0.0
  %1271 = vmatpush1.msra.mxu0 0.0
  %1272 = vmatprep.subr.mxu0 0.0
  %1273 = vmatpush1.msra.mxu0 0.0
  %1274 = vmatprep.subr.mxu0 0.0
  %1275 = vmatpush1.msra.mxu0 0.0
  %1276 = vmatprep.subr.mxu0 0.0
  %1277 = vmatpush1.msra.mxu0 0.0
  %1278 = vmatprep.subr.mxu0 0.0
  %1279 = vmatpush1.msra.mxu0 0.0
  %1280 = vmatprep.subr.mxu0 0.0
  %1281 = vmatpush1.msra.mxu0 0.0
  %1282 = vmatprep.subr.mxu0 0.0
  %1283 = vmatpush1.msra.mxu0 0.0
  %1284 = vmatprep.subr.mxu0 0.0
  %1285 = vmatpush1.msra.mxu0 0.0
  %1286 = vmatprep.subr.mxu0 0.0
  %1287 = vmatpush1.msra.mxu0 0.0
  %1288 = vmatprep.subr.mxu0 0.0
  %1289 = vmatpush1.msra.mxu0 0.0
  %1290 = vmatprep.subr.mxu0 0.0
  %1291 = vmatpush1.msra.mxu0 0.0
  %1292 = vmatprep.subr.mxu0 0.0
  %1293 = vmatpush1.msra.mxu0 0.0
  %1294 = vmatprep.subr.mxu0 0.0
  %1295 = vmatpush1.msra.mxu0 0.0
  %1296 = vmatprep.subr.mxu0 0.0
  %1297 = vmatpush1.msra.mxu0 0.0
  %1298 = vmatprep.subr.mxu0 0.0
  %1299 = vmatpush1.msra.mxu0 0.0
  %1300 = vmatprep.subr.mxu0 0.0
  %1301 = vmatpush1.msra.mxu0 0.0
  %1302 = vmatprep.subr.mxu0 0.0
  %1303 = vmatpush1.msra.mxu0 0.0
  %1304 = vmatprep.subr.mxu0 0.0
  %1305 = vmatpush1.msra.mxu0 0.0
  %1306 = vmatprep.subr.mxu0 0.0
  %1307 = vmatpush1.msra.mxu0 0.0
  %1308 = vmatprep.mubr.f32.mxu0 0.0
  %1309 = vmatmul.mubr.f32.gmra.mrb[0].mxu0 %v1148
  %v1310 = vpop.f32.mrb[0].mxu0
  %v1311 = vadd.f32 0.0, %v1310
  %v1312 = vpop.f32.mrb[0].mxu0
  %1313 = vmatprep.mubr.f32.mxu0 0.0
  %1314 = vmatmul.mubr.f32.gmra.mrb[0].mxu0 %v1151
  %v1315 = vpop.f32.mrb[0].mxu0
  %v1316 = vadd.f32 0.0, %v1315
  %v1317 = vpop.f32.mrb[0].mxu0
  %1318 = vmatprep.mubr.f32.mxu0 0.0
  %1319 = vmatmul.mubr.f32.gmra.mrb[0].mxu0 %v1154
  %v1320 = vpop.f32.mrb[0].mxu0
  %v1321 = vadd.f32 0.0, %v1320
  %v1322 = vpop.f32.mrb[0].mxu0
  %1323 = vmatprep.mubr.f32.mxu0 0.0
  %1324 = vmatmul.mubr.f32.gmra.mrb[0].mxu0 %v1157
  %v1325 = vpop.f32.mrb[0].mxu0
  %v1326 = vadd.f32 0.0, %v1325
  %v1327 = vpop.f32.mrb[0].mxu0
  %1328 = vdwg.mxu0
  %v1329 = vmax.f32 %v1311, 1.0
  %v1330 = vmax.f32 %v1316, 1.0
  %v1331 = vmax.f32 %v1321, 1.0
  %v1332 = vmax.f32 %v1326, 1.0
  %v1333 = vrcp.pop %v1329
  %v1334 = vrcp.pop %v1330
  %v1335 = vrcp.pop %v1331
  %v1336 = vrcp.pop %v1332
  %1338 = vset.pattern.permute.xlu0 0
  %1339 = vperm.xlu0 %1338, %v1333
  %v1340 = vpop.permute.xlu0 %1339
  %1343 = vset.pattern.permute.xlu0 0
  %1344 = vperm.xlu0 %1343, %v1334
  %v1345 = vpop.permute.xlu0 %1344
  %1348 = vset.pattern.permute.xlu0 0
  %1349 = vperm.xlu0 %1348, %v1335
  %v1350 = vpop.permute.xlu0 %1349
  %1353 = vset.pattern.permute.xlu0 0
  %1354 = vperm.xlu0 %1353, %v1336
  %v1355 = vpop.permute.xlu0 %1354
  %v1357 = vmul.f32 %v1226, %v1340
  %v1358 = vmul.f32 %v1231, %v1345
  %v1359 = vmul.f32 %v1236, %v1350
  %v1360 = vmul.f32 %v1241, %v1355
  %v1361 = vld [vmem:[%s3 + $0x90] sm:$0xff]
  %v1362 = vld [vmem:[%s3 + $0x98] sm:$0xff]
  %v1363 = vld [vmem:[%s3 + $0xa0] sm:$0xff]
  %v1364 = vld [vmem:[%s3 + $0xa8] sm:$0xff]
  %v1365 = vld [vmem:[%s3 + $0xb0] sm:$0xff]
  %v1366 = vld [vmem:[%s3 + $0xb8] sm:$0xff]
  %v1367 = vld [vmem:[%s3 + $0xc0] sm:$0xff]
  %v1368 = vld [vmem:[%s3 + $0xc8] sm:$0xff]
  %v1370 = vsel %vm138, %v1357, 0
  %v1373 = vsel %vm138, %v1358, 0
  %v1376 = vsel %vm138, %v1359, 0
  %v1379 = vsel %vm138, %v1360, 0
  %1381 = vmatprep.subr.mxu0 0.0
  %1382 = vmatpush1.msra.mxu0 %v1365
  %1383 = vmatprep.subr.mxu0 0.0
  %1384 = vmatpush1.msra.mxu0 %v1366
  %1385 = vmatprep.subr.mxu0 0.0
  %1386 = vmatpush1.msra.mxu0 %v1367
  %1387 = vmatprep.subr.mxu0 0.0
  %1388 = vmatpush1.msra.mxu0 %v1368
  %1389 = vmatprep.subr.mxu0 0.0
  %1390 = vmatpush1.msra.mxu0 0.0
  %1391 = vmatprep.subr.mxu0 0.0
  %1392 = vmatpush1.msra.mxu0 0.0
  %1393 = vmatprep.subr.mxu0 0.0
  %1394 = vmatpush1.msra.mxu0 0.0
  %1395 = vmatprep.subr.mxu0 0.0
  %1396 = vmatpush1.msra.mxu0 0.0
  %1397 = vmatprep.subr.mxu0 0.0
  %1398 = vmatpush1.msra.mxu0 0.0
  %1399 = vmatprep.subr.mxu0 0.0
  %1400 = vmatpush1.msra.mxu0 0.0
  %1401 = vmatprep.subr.mxu0 0.0
  %1402 = vmatpush1.msra.mxu0 0.0
  %1403 = vmatprep.subr.mxu0 0.0
  %1404 = vmatpush1.msra.mxu0 0.0
  %1405 = vmatprep.subr.mxu0 0.0
  %1406 = vmatpush1.msra.mxu0 0.0
  %1407 = vmatprep.subr.mxu0 0.0
  %1408 = vmatpush1.msra.mxu0 0.0
  %1409 = vmatprep.subr.mxu0 0.0
  %1410 = vmatpush1.msra.mxu0 0.0
  %1411 = vmatprep.subr.mxu0 0.0
  %1412 = vmatpush1.msra.mxu0 0.0
  %1413 = vmatprep.subr.mxu0 0.0
  %1414 = vmatpush1.msra.mxu0 0.0
  %1415 = vmatprep.subr.mxu0 0.0
  %1416 = vmatpush1.msra.mxu0 0.0
  %1417 = vmatprep.subr.mxu0 0.0
  %1418 = vmatpush1.msra.mxu0 0.0
  %1419 = vmatprep.subr.mxu0 0.0
  %1420 = vmatpush1.msra.mxu0 0.0
  %1421 = vmatprep.subr.mxu0 0.0
  %1422 = vmatpush1.msra.mxu0 0.0
  %1423 = vmatprep.subr.mxu0 0.0
  %1424 = vmatpush1.msra.mxu0 0.0
  %1425 = vmatprep.subr.mxu0 0.0
  %1426 = vmatpush1.msra.mxu0 0.0
  %1427 = vmatprep.subr.mxu0 0.0
  %1428 = vmatpush1.msra.mxu0 0.0
  %1429 = vmatprep.subr.mxu0 0.0
  %1430 = vmatpush1.msra.mxu0 0.0
  %1431 = vmatprep.subr.mxu0 0.0
  %1432 = vmatpush1.msra.mxu0 0.0
  %1433 = vmatprep.subr.mxu0 0.0
  %1434 = vmatpush1.msra.mxu0 0.0
  %1435 = vmatprep.subr.mxu0 0.0
  %1436 = vmatpush1.msra.mxu0 0.0
  %1437 = vmatprep.subr.mxu0 0.0
  %1438 = vmatpush1.msra.mxu0 0.0
  %1439 = vmatprep.subr.mxu0 0.0
  %1440 = vmatpush1.msra.mxu0 0.0
  %1441 = vmatprep.subr.mxu0 0.0
  %1442 = vmatpush1.msra.mxu0 0.0
  %1443 = vmatprep.subr.mxu0 0.0
  %1444 = vmatpush1.msra.mxu0 0.0
  %1445 = vmatprep.mubr.f32.mxu0 0.0
  %1446 = vmatmul.mubr.f32.gmra.mrb[0].mxu0 %v1370
  %v1447 = vpop.f32.mrb[0].mxu0
  %v1448 = vadd.f32 0.0, %v1447
  %v1449 = vpop.f32.mrb[0].mxu0
  %1450 = vmatprep.mubr.f32.mxu0 0.0
  %1451 = vmatmul.mubr.f32.gmra.mrb[0].mxu0 %v1373
  %v1452 = vpop.f32.mrb[0].mxu0
  %v1453 = vadd.f32 0.0, %v1452
  %v1454 = vpop.f32.mrb[0].mxu0
  %1455 = vmatprep.mubr.f32.mxu0 0.0
  %1456 = vmatmul.mubr.f32.gmra.mrb[0].mxu0 %v1376
  %v1457 = vpop.f32.mrb[0].mxu0
  %v1458 = vadd.f32 0.0, %v1457
  %v1459 = vpop.f32.mrb[0].mxu0
  %1460 = vmatprep.mubr.f32.mxu0 0.0
  %1461 = vmatmul.mubr.f32.gmra.mrb[0].mxu0 %v1379
  %v1462 = vpop.f32.mrb[0].mxu0
  %v1463 = vadd.f32 0.0, %v1462
  %v1464 = vpop.f32.mrb[0].mxu0
  %1465 = vdwg.mxu0
  %v1467 = vsel %vm138, %v218, 0
  %v1470 = vsel %vm138, %v223, 0
  %v1473 = vsel %vm138, %v228, 0
  %v1476 = vsel %vm138, %v233, 0
  %1478 = vmatprep.subr.mxu0 0.0
  %1479 = vmatpush1.msra.mxu0 %v1361
  %1480 = vmatprep.subr.mxu0 0.0
  %1481 = vmatpush1.msra.mxu0 %v1362
  %1482 = vmatprep.subr.mxu0 0.0
  %1483 = vmatpush1.msra.mxu0 %v1363
  %1484 = vmatprep.subr.mxu0 0.0
  %1485 = vmatpush1.msra.mxu0 %v1364
  %1486 = vmatprep.subr.mxu0 0.0
  %1487 = vmatpush1.msra.mxu0 0.0
  %1488 = vmatprep.subr.mxu0 0.0
  %1489 = vmatpush1.msra.mxu0 0.0
  %1490 = vmatprep.subr.mxu0 0.0
  %1491 = vmatpush1.msra.mxu0 0.0
  %1492 = vmatprep.subr.mxu0 0.0
  %1493 = vmatpush1.msra.mxu0 0.0
  %1494 = vmatprep.subr.mxu0 0.0
  %1495 = vmatpush1.msra.mxu0 0.0
  %1496 = vmatprep.subr.mxu0 0.0
  %1497 = vmatpush1.msra.mxu0 0.0
  %1498 = vmatprep.subr.mxu0 0.0
  %1499 = vmatpush1.msra.mxu0 0.0
  %1500 = vmatprep.subr.mxu0 0.0
  %1501 = vmatpush1.msra.mxu0 0.0
  %1502 = vmatprep.subr.mxu0 0.0
  %1503 = vmatpush1.msra.mxu0 0.0
  %1504 = vmatprep.subr.mxu0 0.0
  %1505 = vmatpush1.msra.mxu0 0.0
  %1506 = vmatprep.subr.mxu0 0.0
  %1507 = vmatpush1.msra.mxu0 0.0
  %1508 = vmatprep.subr.mxu0 0.0
  %1509 = vmatpush1.msra.mxu0 0.0
  %1510 = vmatprep.subr.mxu0 0.0
  %1511 = vmatpush1.msra.mxu0 0.0
  %1512 = vmatprep.subr.mxu0 0.0
  %1513 = vmatpush1.msra.mxu0 0.0
  %1514 = vmatprep.subr.mxu0 0.0
  %1515 = vmatpush1.msra.mxu0 0.0
  %1516 = vmatprep.subr.mxu0 0.0
  %1517 = vmatpush1.msra.mxu0 0.0
  %1518 = vmatprep.subr.mxu0 0.0
  %1519 = vmatpush1.msra.mxu0 0.0
  %1520 = vmatprep.subr.mxu0 0.0
  %1521 = vmatpush1.msra.mxu0 0.0
  %1522 = vmatprep.subr.mxu0 0.0
  %1523 = vmatpush1.msra.mxu0 0.0
  %1524 = vmatprep.subr.mxu0 0.0
  %1525 = vmatpush1.msra.mxu0 0.0
  %1526 = vmatprep.subr.mxu0 0.0
  %1527 = vmatpush1.msra.mxu0 0.0
  %1528 = vmatprep.subr.mxu0 0.0
  %1529 = vmatpush1.msra.mxu0 0.0
  %1530 = vmatprep.subr.mxu0 0.0
  %1531 = vmatpush1.msra.mxu0 0.0
  %1532 = vmatprep.subr.mxu0 0.0
  %1533 = vmatpush1.msra.mxu0 0.0
  %1534 = vmatprep.subr.mxu0 0.0
  %1535 = vmatpush1.msra.mxu0 0.0
  %1536 = vmatprep.subr.mxu0 0.0
  %1537 = vmatpush1.msra.mxu0 0.0
  %1538 = vmatprep.subr.mxu0 0.0
  %1539 = vmatpush1.msra.mxu0 0.0
  %1540 = vmatprep.subr.mxu0 0.0
  %1541 = vmatpush1.msra.mxu0 0.0
  %1542 = vmatprep.mubr.f32.mxu0 0.0
  %1543 = vmatmul.mubr.f32.gmra.mrb[0].mxu0 %v1467
  %v1544 = vpop.f32.mrb[0].mxu0
  %v1545 = vadd.f32 %v1448, %v1544
  %v1546 = vpop.f32.mrb[0].mxu0
  %1547 = vmatprep.mubr.f32.mxu0 0.0
  %1548 = vmatmul.mubr.f32.gmra.mrb[0].mxu0 %v1470
  %v1549 = vpop.f32.mrb[0].mxu0
  %v1550 = vadd.f32 %v1453, %v1549
  %v1551 = vpop.f32.mrb[0].mxu0
  %1552 = vmatprep.mubr.f32.mxu0 0.0
  %1553 = vmatmul.mubr.f32.gmra.mrb[0].mxu0 %v1473
  %v1554 = vpop.f32.mrb[0].mxu0
  %v1555 = vadd.f32 %v1458, %v1554
  %v1556 = vpop.f32.mrb[0].mxu0
  %1557 = vmatprep.mubr.f32.mxu0 0.0
  %1558 = vmatmul.mubr.f32.gmra.mrb[0].mxu0 %v1476
  %v1559 = vpop.f32.mrb[0].mxu0
  %v1560 = vadd.f32 %v1463, %v1559
  %v1561 = vpop.f32.mrb[0].mxu0
  %1562 = vdwg.mxu0
  %v1563 = vld [vmem:[%s3 + $0x134] sm:$0x1]
  %v1564 = vlaneseq
  %v1565 = vshrl.u32 %v1564, 7
  %v1566 = vsub.s32 0, %v1565
  %v1567 = vrot.slane %v1563, %v1566
  %v1568 = vadd.f32 %v1545, %v1567
  %v1569 = vadd.f32 %v1550, %v1567
  %v1570 = vadd.f32 %v1555, %v1567
  %v1571 = vadd.f32 %v1560, %v1567
  %v1572 = vmax.f32 %v1568, 0.0
  %v1573 = vmax.f32 %v1569, 0.0
  %v1574 = vmax.f32 %v1570, 0.0
  %v1575 = vmax.f32 %v1571, 0.0
  %v1576 = vld [vmem:[%s3 + $0xd0] sm:$0xff]
  %v1577 = vld [vmem:[%s3 + $0xd8] sm:$0xff]
  %v1578 = vld [vmem:[%s3 + $0xe0] sm:$0xff]
  %v1579 = vld [vmem:[%s3 + $0xe8] sm:$0xff]
  %v1580 = vld [vmem:[%s3 + $0x135] sm:$0x1]
  %v1581 = vlaneseq
  %v1582 = vshrl.u32 %v1581, 7
  %v1583 = vsub.s32 0, %v1582
  %v1584 = vrot.slane %v1580, %v1583
  %v1586 = vsel %vm138, %v1572, 0
  %v1589 = vsel %vm138, %v1573, 0
  %v1592 = vsel %vm138, %v1574, 0
  %v1595 = vsel %vm138, %v1575, 0
  %1597 = vmatprep.subr.mxu0 0.0
  %1598 = vmatpush1.msra.mxu0 %v1576
  %1599 = vmatprep.subr.mxu0 0.0
  %1600 = vmatpush1.msra.mxu0 %v1577
  %1601 = vmatprep.subr.mxu0 0.0
  %1602 = vmatpush1.msra.mxu0 %v1578
  %1603 = vmatprep.subr.mxu0 0.0
  %1604 = vmatpush1.msra.mxu0 %v1579
  %1605 = vmatprep.subr.mxu0 0.0
  %1606 = vmatpush1.msra.mxu0 0.0
  %1607 = vmatprep.subr.mxu0 0.0
  %1608 = vmatpush1.msra.mxu0 0.0
  %1609 = vmatprep.subr.mxu0 0.0
  %1610 = vmatpush1.msra.mxu0 0.0
  %1611 = vmatprep.subr.mxu0 0.0
  %1612 = vmatpush1.msra.mxu0 0.0
  %1613 = vmatprep.subr.mxu0 0.0
  %1614 = vmatpush1.msra.mxu0 0.0
  %1615 = vmatprep.subr.mxu0 0.0
  %1616 = vmatpush1.msra.mxu0 0.0
  %1617 = vmatprep.subr.mxu0 0.0
  %1618 = vmatpush1.msra.mxu0 0.0
  %1619 = vmatprep.subr.mxu0 0.0
  %1620 = vmatpush1.msra.mxu0 0.0
  %1621 = vmatprep.subr.mxu0 0.0
  %1622 = vmatpush1.msra.mxu0 0.0
  %1623 = vmatprep.subr.mxu0 0.0
  %1624 = vmatpush1.msra.mxu0 0.0
  %1625 = vmatprep.subr.mxu0 0.0
  %1626 = vmatpush1.msra.mxu0 0.0
  %1627 = vmatprep.subr.mxu0 0.0
  %1628 = vmatpush1.msra.mxu0 0.0
  %1629 = vmatprep.subr.mxu0 0.0
  %1630 = vmatpush1.msra.mxu0 0.0
  %1631 = vmatprep.subr.mxu0 0.0
  %1632 = vmatpush1.msra.mxu0 0.0
  %1633 = vmatprep.subr.mxu0 0.0
  %1634 = vmatpush1.msra.mxu0 0.0
  %1635 = vmatprep.subr.mxu0 0.0
  %1636 = vmatpush1.msra.mxu0 0.0
  %1637 = vmatprep.subr.mxu0 0.0
  %1638 = vmatpush1.msra.mxu0 0.0
  %1639 = vmatprep.subr.mxu0 0.0
  %1640 = vmatpush1.msra.mxu0 0.0
  %1641 = vmatprep.subr.mxu0 0.0
  %1642 = vmatpush1.msra.mxu0 0.0
  %1643 = vmatprep.subr.mxu0 0.0
  %1644 = vmatpush1.msra.mxu0 0.0
  %1645 = vmatprep.subr.mxu0 0.0
  %1646 = vmatpush1.msra.mxu0 0.0
  %1647 = vmatprep.subr.mxu0 0.0
  %1648 = vmatpush1.msra.mxu0 0.0
  %1649 = vmatprep.subr.mxu0 0.0
  %1650 = vmatpush1.msra.mxu0 0.0
  %1651 = vmatprep.subr.mxu0 0.0
  %1652 = vmatpush1.msra.mxu0 0.0
  %1653 = vmatprep.subr.mxu0 0.0
  %1654 = vmatpush1.msra.mxu0 0.0
  %1655 = vmatprep.subr.mxu0 0.0
  %1656 = vmatpush1.msra.mxu0 0.0
  %1657 = vmatprep.subr.mxu0 0.0
  %1658 = vmatpush1.msra.mxu0 0.0
  %1659 = vmatprep.subr.mxu0 0.0
  %1660 = vmatpush1.msra.mxu0 0.0
  %1661 = vmatprep.mubr.f32.mxu0 0.0
  %1662 = vmatmul.mubr.f32.gmra.mrb[0].mxu0 %v1586
  %v1663 = vpop.f32.mrb[0].mxu0
  %v1664 = vadd.f32 %v1584, %v1663
  %v1665 = vpop.f32.mrb[0].mxu0
  %1666 = vmatprep.mubr.f32.mxu0 0.0
  %1667 = vmatmul.mubr.f32.gmra.mrb[0].mxu0 %v1589
  %v1668 = vpop.f32.mrb[0].mxu0
  %v1669 = vadd.f32 %v1584, %v1668
  %v1670 = vpop.f32.mrb[0].mxu0
  %1671 = vmatprep.mubr.f32.mxu0 0.0
  %1672 = vmatmul.mubr.f32.gmra.mrb[0].mxu0 %v1592
  %v1673 = vpop.f32.mrb[0].mxu0
  %v1674 = vadd.f32 %v1584, %v1673
  %v1675 = vpop.f32.mrb[0].mxu0
  %1676 = vmatprep.mubr.f32.mxu0 0.0
  %1677 = vmatmul.mubr.f32.gmra.mrb[0].mxu0 %v1595
  %v1678 = vpop.f32.mrb[0].mxu0
  %v1679 = vadd.f32 %v1584, %v1678
  %v1680 = vpop.f32.mrb[0].mxu0
  %1681 = vdwg.mxu0
  %v1682 = vld [vmem:[%s3 + $0xf0] sm:$0xff]
  %v1683 = vld [vmem:[%s3 + $0xf8] sm:$0xff]
  %v1684 = vld [vmem:[%s3 + $0x100] sm:$0xff]
  %v1685 = vld [vmem:[%s3 + $0x108] sm:$0xff]
  %v1686 = vld [vmem:[%s3 + $0x136] sm:$0x1]
  %v1687 = vlaneseq
  %v1688 = vshrl.u32 %v1687, 7
  %v1689 = vsub.s32 0, %v1688
  %v1690 = vrot.slane %v1686, %v1689
  %v1692 = vsel %vm138, %v1664, 0
  %v1695 = vsel %vm138, %v1669, 0
  %v1698 = vsel %vm138, %v1674, 0
  %v1701 = vsel %vm138, %v1679, 0
  %1703 = vmatprep.subr.mxu0 0.0
  %1704 = vmatpush1.msra.mxu0 %v1682
  %1705 = vmatprep.subr.mxu0 0.0
  %1706 = vmatpush1.msra.mxu0 %v1683
  %1707 = vmatprep.subr.mxu0 0.0
  %1708 = vmatpush1.msra.mxu0 %v1684
  %1709 = vmatprep.subr.mxu0 0.0
  %1710 = vmatpush1.msra.mxu0 %v1685
  %1711 = vmatprep.subr.mxu0 0.0
  %1712 = vmatpush1.msra.mxu0 0.0
  %1713 = vmatprep.subr.mxu0 0.0
  %1714 = vmatpush1.msra.mxu0 0.0
  %1715 = vmatprep.subr.mxu0 0.0
  %1716 = vmatpush1.msra.mxu0 0.0
  %1717 = vmatprep.subr.mxu0 0.0
  %1718 = vmatpush1.msra.mxu0 0.0
  %1719 = vmatprep.subr.mxu0 0.0
  %1720 = vmatpush1.msra.mxu0 0.0
  %1721 = vmatprep.subr.mxu0 0.0
  %1722 = vmatpush1.msra.mxu0 0.0
  %1723 = vmatprep.subr.mxu0 0.0
  %1724 = vmatpush1.msra.mxu0 0.0
  %1725 = vmatprep.subr.mxu0 0.0
  %1726 = vmatpush1.msra.mxu0 0.0
  %1727 = vmatprep.subr.mxu0 0.0
  %1728 = vmatpush1.msra.mxu0 0.0
  %1729 = vmatprep.subr.mxu0 0.0
  %1730 = vmatpush1.msra.mxu0 0.0
  %1731 = vmatprep.subr.mxu0 0.0
  %1732 = vmatpush1.msra.mxu0 0.0
  %1733 = vmatprep.subr.mxu0 0.0
  %1734 = vmatpush1.msra.mxu0 0.0
  %1735 = vmatprep.subr.mxu0 0.0
  %1736 = vmatpush1.msra.mxu0 0.0
  %1737 = vmatprep.subr.mxu0 0.0
  %1738 = vmatpush1.msra.mxu0 0.0
  %1739 = vmatprep.subr.mxu0 0.0
  %1740 = vmatpush1.msra.mxu0 0.0
  %1741 = vmatprep.subr.mxu0 0.0
  %1742 = vmatpush1.msra.mxu0 0.0
  %1743 = vmatprep.subr.mxu0 0.0
  %1744 = vmatpush1.msra.mxu0 0.0
  %1745 = vmatprep.subr.mxu0 0.0
  %1746 = vmatpush1.msra.mxu0 0.0
  %1747 = vmatprep.subr.mxu0 0.0
  %1748 = vmatpush1.msra.mxu0 0.0
  %1749 = vmatprep.subr.mxu0 0.0
  %1750 = vmatpush1.msra.mxu0 0.0
  %1751 = vmatprep.subr.mxu0 0.0
  %1752 = vmatpush1.msra.mxu0 0.0
  %1753 = vmatprep.subr.mxu0 0.0
  %1754 = vmatpush1.msra.mxu0 0.0
  %1755 = vmatprep.subr.mxu0 0.0
  %1756 = vmatpush1.msra.mxu0 0.0
  %1757 = vmatprep.subr.mxu0 0.0
  %1758 = vmatpush1.msra.mxu0 0.0
  %1759 = vmatprep.subr.mxu0 0.0
  %1760 = vmatpush1.msra.mxu0 0.0
  %1761 = vmatprep.subr.mxu0 0.0
  %1762 = vmatpush1.msra.mxu0 0.0
  %1763 = vmatprep.subr.mxu0 0.0
  %1764 = vmatpush1.msra.mxu0 0.0
  %1765 = vmatprep.subr.mxu0 0.0
  %1766 = vmatpush1.msra.mxu0 0.0
  %1767 = vmatprep.mubr.f32.mxu0 0.0
  %1768 = vmatmul.mubr.f32.gmra.mrb[0].mxu0 %v1692
  %v1769 = vpop.f32.mrb[0].mxu0
  %v1770 = vadd.f32 %v1690, %v1769
  %v1771 = vpop.f32.mrb[0].mxu0
  %1772 = vmatprep.mubr.f32.mxu0 0.0
  %1773 = vmatmul.mubr.f32.gmra.mrb[0].mxu0 %v1695
  %v1774 = vpop.f32.mrb[0].mxu0
  %v1775 = vadd.f32 %v1690, %v1774
  %v1776 = vpop.f32.mrb[0].mxu0
  %1777 = vmatprep.mubr.f32.mxu0 0.0
  %1778 = vmatmul.mubr.f32.gmra.mrb[0].mxu0 %v1698
  %v1779 = vpop.f32.mrb[0].mxu0
  %v1780 = vadd.f32 %v1690, %v1779
  %v1781 = vpop.f32.mrb[0].mxu0
  %1782 = vmatprep.mubr.f32.mxu0 0.0
  %1783 = vmatmul.mubr.f32.gmra.mrb[0].mxu0 %v1701
  %v1784 = vpop.f32.mrb[0].mxu0
  %v1785 = vadd.f32 %v1690, %v1784
  %v1786 = vpop.f32.mrb[0].mxu0
  %1787 = vdwg.mxu0
  %v1788 = vmax.f32 %v1770, 0.0
  %v1789 = vmax.f32 %v1775, 0.0
  %v1790 = vmax.f32 %v1780, 0.0
  %v1791 = vmax.f32 %v1785, 0.0
  %v1792 = vld [vmem:[%s3 + $0x110] sm:$0xff]
  %v1793 = vld [vmem:[%s3 + $0x118] sm:$0xff]
  %v1794 = vld [vmem:[%s3 + $0x120] sm:$0xff]
  %v1795 = vld [vmem:[%s3 + $0x128] sm:$0xff]
  %v1796 = vld [vmem:[%s3 + $0x137] sm:$0x1]
  %v1797 = vlaneseq
  %v1798 = vshrl.u32 %v1797, 7
  %v1799 = vsub.s32 0, %v1798
  %v1800 = vrot.slane %v1796, %v1799
  %v1802 = vsel %vm138, %v1788, 0
  %v1805 = vsel %vm138, %v1789, 0
  %v1808 = vsel %vm138, %v1790, 0
  %v1811 = vsel %vm138, %v1791, 0
  %1813 = vmatprep.subr.mxu0 0.0
  %1814 = vmatpush1.msra.mxu0 %v1792
  %1815 = vmatprep.subr.mxu0 0.0
  %1816 = vmatpush1.msra.mxu0 %v1793
  %1817 = vmatprep.subr.mxu0 0.0
  %1818 = vmatpush1.msra.mxu0 %v1794
  %1819 = vmatprep.subr.mxu0 0.0
  %1820 = vmatpush1.msra.mxu0 %v1795
  %1821 = vmatprep.subr.mxu0 0.0
  %1822 = vmatpush1.msra.mxu0 0.0
  %1823 = vmatprep.subr.mxu0 0.0
  %1824 = vmatpush1.msra.mxu0 0.0
  %1825 = vmatprep.subr.mxu0 0.0
  %1826 = vmatpush1.msra.mxu0 0.0
  %1827 = vmatprep.subr.mxu0 0.0
  %1828 = vmatpush1.msra.mxu0 0.0
  %1829 = vmatprep.subr.mxu0 0.0
  %1830 = vmatpush1.msra.mxu0 0.0
  %1831 = vmatprep.subr.mxu0 0.0
  %1832 = vmatpush1.msra.mxu0 0.0
  %1833 = vmatprep.subr.mxu0 0.0
  %1834 = vmatpush1.msra.mxu0 0.0
  %1835 = vmatprep.subr.mxu0 0.0
  %1836 = vmatpush1.msra.mxu0 0.0
  %1837 = vmatprep.subr.mxu0 0.0
  %1838 = vmatpush1.msra.mxu0 0.0
  %1839 = vmatprep.subr.mxu0 0.0
  %1840 = vmatpush1.msra.mxu0 0.0
  %1841 = vmatprep.subr.mxu0 0.0
  %1842 = vmatpush1.msra.mxu0 0.0
  %1843 = vmatprep.subr.mxu0 0.0
  %1844 = vmatpush1.msra.mxu0 0.0
  %1845 = vmatprep.subr.mxu0 0.0
  %1846 = vmatpush1.msra.mxu0 0.0
  %1847 = vmatprep.subr.mxu0 0.0
  %1848 = vmatpush1.msra.mxu0 0.0
  %1849 = vmatprep.subr.mxu0 0.0
  %1850 = vmatpush1.msra.mxu0 0.0
  %1851 = vmatprep.subr.mxu0 0.0
  %1852 = vmatpush1.msra.mxu0 0.0
  %1853 = vmatprep.subr.mxu0 0.0
  %1854 = vmatpush1.msra.mxu0 0.0
  %1855 = vmatprep.subr.mxu0 0.0
  %1856 = vmatpush1.msra.mxu0 0.0
  %1857 = vmatprep.subr.mxu0 0.0
  %1858 = vmatpush1.msra.mxu0 0.0
  %1859 = vmatprep.subr.mxu0 0.0
  %1860 = vmatpush1.msra.mxu0 0.0
  %1861 = vmatprep.subr.mxu0 0.0
  %1862 = vmatpush1.msra.mxu0 0.0
  %1863 = vmatprep.subr.mxu0 0.0
  %1864 = vmatpush1.msra.mxu0 0.0
  %1865 = vmatprep.subr.mxu0 0.0
  %1866 = vmatpush1.msra.mxu0 0.0
  %1867 = vmatprep.subr.mxu0 0.0
  %1868 = vmatpush1.msra.mxu0 0.0
  %1869 = vmatprep.subr.mxu0 0.0
  %1870 = vmatpush1.msra.mxu0 0.0
  %1871 = vmatprep.subr.mxu0 0.0
  %1872 = vmatpush1.msra.mxu0 0.0
  %1873 = vmatprep.subr.mxu0 0.0
  %1874 = vmatpush1.msra.mxu0 0.0
  %1875 = vmatprep.subr.mxu0 0.0
  %1876 = vmatpush1.msra.mxu0 0.0
  %1877 = vmatprep.mubr.f32.mxu0 0.0
  %1878 = vmatmul.mubr.f32.gmra.mrb[0].mxu0 %v1802
  %v1879 = vpop.f32.mrb[0].mxu0
  %v1880 = vadd.f32 %v1800, %v1879
  %v1881 = vpop.f32.mrb[0].mxu0
  %1882 = vmatprep.mubr.f32.mxu0 0.0
  %1883 = vmatmul.mubr.f32.gmra.mrb[0].mxu0 %v1805
  %v1884 = vpop.f32.mrb[0].mxu0
  %v1885 = vadd.f32 %v1800, %v1884
  %v1886 = vpop.f32.mrb[0].mxu0
  %1887 = vmatprep.mubr.f32.mxu0 0.0
  %1888 = vmatmul.mubr.f32.gmra.mrb[0].mxu0 %v1808
  %v1889 = vpop.f32.mrb[0].mxu0
  %v1890 = vadd.f32 %v1800, %v1889
  %v1891 = vpop.f32.mrb[0].mxu0
  %1892 = vmatprep.mubr.f32.mxu0 0.0
  %1893 = vmatmul.mubr.f32.gmra.mrb[0].mxu0 %v1811
  %v1894 = vpop.f32.mrb[0].mxu0
  %v1895 = vadd.f32 %v1800, %v1894
  %v1896 = vpop.f32.mrb[0].mxu0
  %1897 = vdwg.mxu0
  %vm1898 = vcmask 31744
  %1899 = vst.msk [vmem:[%s4] sm:$0xff] %vm1898, %v1880
  %1900 = vst.msk [vmem:[%s4 + $0x8] sm:$0xff] %vm1898, %v1885
  %1901 = vst.msk [vmem:[%s4 + $0x10] sm:$0xff] %vm1898, %v1890
  %1902 = vst.msk [vmem:[%s4 + $0x18] sm:$0xff] %vm1898, %v1895
  // Predicated region
  $region18: #{mp_gnn_forward.1} parent=0 // pred_check
    _
  $region19: #{mp_gnn_forward.1} parent=0 // pred_check_branch
    %1904 = sbr.rel (0) target = $region21
  $region20: #{mp_gnn_forward.1} parent=0 // pred_region
    _
  $region21: #{mp_gnn_forward.1} parent=0 // pred_fallthru
    _
  // Predicated region
  $region22: #{mp_gnn_forward.1} parent=0 // pred_check
    _
  $region23: #{mp_gnn_forward.1} parent=0 // pred_check_branch
    %1906 = sbr.rel (0) target = $region25
  $region24: #{mp_gnn_forward.1} parent=0 // pred_region
    _
  $region25: #{mp_gnn_forward.1} parent=0 // pred_fallthru
    _

</llo_original>
